<compile_context>
chip_gen: v7x
topology: tpu7x:2x2x1
jax: 0.10.0
libtpu: 0.0.40
codegen_flags: <defaults>
</compile_context>

<pallas_src>
import math

import jax
import jax.numpy as jnp
from jax import lax
from jax.experimental import pallas as pl
from jax.experimental.pallas import tpu as pltpu


# ----------------------------- Pallas kernel ------------------------------ #

def idihr_kernel(pool_r_ref, pool_w_ref, m_ref,
                 wqkv1_ref, bqkv1_ref,
                 wqkv2_ref, bqkv2_ref,
                 wqkv3_ref, bqkv3_ref,
                 wfc_r_ref, wfc_w_ref, wfc_m_ref, bfc_ref,
                 out_ref):

    def fused_self_attention(x, wqkv_ref, bqkv_ref):
        # x: [B, F] bf16, wqkv: [F, 3F] bf16 (q-columns pre-scaled by 1/sqrt(F)),
        # bqkv: [1, 3F] f32.
        f = x.shape[-1]
        qkv = jnp.dot(x, wqkv_ref[...],
                      preferred_element_type=jnp.float32) + bqkv_ref[...]
        q = qkv[:, :f].astype(jnp.bfloat16)
        k = qkv[:, f:2 * f].astype(jnp.bfloat16)
        v = qkv[:, 2 * f:].astype(jnp.bfloat16)
        # q @ k^T without a materialized transpose: contract last dims.
        s = lax.dot_general(q, k,
                            dimension_numbers=(((1,), (1,)), ((), ())),
                            preferred_element_type=jnp.float32)
        # softmax over the key (batch) axis, in f32
        s = s - jnp.max(s, axis=-1, keepdims=True)
        e = jnp.exp(s)
        p = e * pl.reciprocal(jnp.sum(e, axis=-1, keepdims=True), approx=True)
        return jnp.dot(p.astype(jnp.bfloat16), v,
                       preferred_element_type=jnp.float32)

    x1 = fused_self_attention(pool_r_ref[...], wqkv1_ref, bqkv1_ref)
    x2 = fused_self_attention(pool_w_ref[...], wqkv2_ref, bqkv2_ref)
    x3 = fused_self_attention(m_ref[...], wqkv3_ref, bqkv3_ref)

    # fc(cat([x1, x2, x3], dim=1)) == x1 @ Wfc_r + x2 @ Wfc_w + x3 @ Wfc_m + b
    # (fc weights column-padded to a lane-dense output width)
    y = (jnp.dot(x1.astype(jnp.bfloat16), wfc_r_ref[...],
                 preferred_element_type=jnp.float32)
         + jnp.dot(x2.astype(jnp.bfloat16), wfc_w_ref[...],
                   preferred_element_type=jnp.float32)
         + jnp.dot(x3.astype(jnp.bfloat16), wfc_m_ref[...],
                   preferred_element_type=jnp.float32)
         + bfc_ref[...])
    out_ref[...] = y.astype(out_ref.dtype)


# --------------------- one-time parameter preparation ---------------------- #

def prepare_params(p, lane_pad=128):
    """Pack/rescale/cast the logical parameters into kernel-ready form."""

    def pack_qkv(wq, bq, wk, bk, wv, bv):
        feature_dim = wq.shape[0]
        scale = 1.0 / math.sqrt(feature_dim)
        # fold the attention scale into the query projection
        wqkv = jnp.concatenate([wq * scale, wk, wv], axis=1).astype(jnp.bfloat16)
        bqkv = jnp.concatenate([bq * scale, bk, bv], axis=1).astype(jnp.float32)
        return wqkv, bqkv

    kp = {}
    kp["wqkv1"], kp["bqkv1"] = pack_qkv(p["wq1"], p["bq1"], p["wk1"], p["bk1"],
                                        p["wv1"], p["bv1"])
    kp["wqkv2"], kp["bqkv2"] = pack_qkv(p["wq2"], p["bq2"], p["wk2"], p["bk2"],
                                        p["wv2"], p["bv2"])
    kp["wqkv3"], kp["bqkv3"] = pack_qkv(p["wq3"], p["bq3"], p["wk3"], p["bk3"],
                                        p["wv3"], p["bv3"])

    num_labels = p["b_fc"].shape[-1]
    padded = ((num_labels + lane_pad - 1) // lane_pad) * lane_pad
    pad = padded - num_labels
    kp["wfc_r"] = jnp.pad(p["w_fc_r"], ((0, 0), (0, pad))).astype(jnp.bfloat16)
    kp["wfc_w"] = jnp.pad(p["w_fc_w"], ((0, 0), (0, pad))).astype(jnp.bfloat16)
    kp["wfc_m"] = jnp.pad(p["w_fc_m"], ((0, 0), (0, pad))).astype(jnp.bfloat16)
    kp["bfc"] = jnp.pad(p["b_fc"], ((0, 0), (0, pad))).astype(jnp.float32)
    kp["num_labels"] = num_labels
    return kp


# ------------------------------- wrapper ----------------------------------- #

def idihr_forward(pool_r, pool_w, m, kp):
    B = pool_r.shape[0]
    n_padded = kp["bfc"].shape[-1]

    args = (
        pool_r.astype(jnp.bfloat16), pool_w.astype(jnp.bfloat16),
        m.astype(jnp.bfloat16),
        kp["wqkv1"], kp["bqkv1"],
        kp["wqkv2"], kp["bqkv2"],
        kp["wqkv3"], kp["bqkv3"],
        kp["wfc_r"], kp["wfc_w"], kp["wfc_m"], kp["bfc"],
    )
    vmem_spec = pl.BlockSpec(memory_space=pltpu.MemorySpace.VMEM)
    out = pl.pallas_call(
        idihr_kernel,
        out_shape=jax.ShapeDtypeStruct((B, n_padded), jnp.float32),
        in_specs=[vmem_spec] * len(args),
        out_specs=vmem_spec,
    )(*args)
    return out[:, :kp["num_labels"]]


# ------------------------ deterministic param init ------------------------- #

def init_params(key, hidden_r, hidden_w, max_len, num_labels):
    ks = jax.random.split(key, 13)

    def lin(k, fan_in, fan_out):
        kw, kb = jax.random.split(k)
        w = jax.random.normal(kw, (fan_in, fan_out), jnp.float32) * 0.05
        b = jax.random.normal(kb, (1, fan_out), jnp.float32) * 0.05
        return w, b

    p = {}
    p["wq1"], p["bq1"] = lin(ks[0], hidden_r, hidden_r)
    p["wk1"], p["bk1"] = lin(ks[1], hidden_r, hidden_r)
    p["wv1"], p["bv1"] = lin(ks[2], hidden_r, hidden_r)
    p["wq2"], p["bq2"] = lin(ks[3], hidden_w, hidden_w)
    p["wk2"], p["bk2"] = lin(ks[4], hidden_w, hidden_w)
    p["wv2"], p["bv2"] = lin(ks[5], hidden_w, hidden_w)
    p["wq3"], p["bq3"] = lin(ks[6], max_len, max_len)
    p["wk3"], p["bk3"] = lin(ks[7], max_len, max_len)
    p["wv3"], p["bv3"] = lin(ks[8], max_len, max_len)
    # final fc over the concatenated feature vector, split column-wise
    w_fc, b_fc = lin(ks[9], hidden_r + hidden_w + max_len, num_labels)
    p["w_fc_r"] = w_fc[:hidden_r]
    p["w_fc_w"] = w_fc[hidden_r:hidden_r + hidden_w]
    p["w_fc_m"] = w_fc[hidden_r + hidden_w:]
    p["b_fc"] = b_fc
    return p


# --------------------------- pure-JAX reference ----------------------------- #

def ref_forward(pool_r, pool_w, m, p):
    def sa(x, wq, bq, wk, bk, wv, bv):
        q = x @ wq + bq
        k = x @ wk + bk
        v = x @ wv + bv
        s = jax.nn.softmax((q @ k.T) / math.sqrt(x.shape[-1]), axis=-1)
        return s @ v

    x1 = sa(pool_r, p["wq1"], p["bq1"], p["wk1"], p["bk1"], p["wv1"], p["bv1"])
    x2 = sa(pool_w, p["wq2"], p["bq2"], p["wk2"], p["bk2"], p["wv2"], p["bv2"])
    x3 = sa(m, p["wq3"], p["bq3"], p["wk3"], p["bk3"], p["wv3"], p["bv3"])
    cat = jnp.concatenate([x1, x2, x3], axis=1)
    w_fc = jnp.concatenate([p["w_fc_r"], p["w_fc_w"], p["w_fc_m"]], axis=0)
    return cat @ w_fc + p["b_fc"]


# --------------------------------- main ------------------------------------ #

if __name__ == "__main__":
    B = 8            # batch size (SelfAttention mixes batch rows: B x B scores)
    HIDDEN_R = 128   # roberta hidden size (synthetic, lane-aligned)
    HIDDEN_W = 128   # wobert hidden size (synthetic, lane-aligned)
    MAX_LEN = 128    # max_len (mask length)
    NUM_LABELS = 4

    key = jax.random.PRNGKey(0)
    k_in, k_p = jax.random.split(key)
    k1, k2, k3 = jax.random.split(k_in, 3)

    pool_r = jax.random.normal(k1, (B, HIDDEN_R), jnp.float32)
    pool_w = jax.random.normal(k2, (B, HIDDEN_W), jnp.float32)
    mask = (jax.random.uniform(k3, (B, MAX_LEN)) > 0.3).astype(jnp.float32)

    params = init_params(k_p, HIDDEN_R, HIDDEN_W, MAX_LEN, NUM_LABELS)
    kernel_params = prepare_params(params)   # one-time pack/scale/cast/pad

    out = idihr_forward(pool_r, pool_w, mask, kernel_params)
    out = jax.block_until_ready(out)

    ref = ref_forward(pool_r, pool_w, mask, params)
    assert out.shape == (B, NUM_LABELS)
    # bf16 MXU operands + approx reciprocal -> looser tolerance than pure-f32
    assert jnp.allclose(out, ref, atol=5e-2, rtol=5e-2), (out, ref)

    print("KERNEL_OK")
</pallas_src>

<mosaic_0001>
module attributes {stable_mosaic.version = 11 : i64} {
  func.func @idihr_kernel(%arg0: memref<8x128xbf16, #tpu.memory_space<vmem>>, %arg1: memref<8x128xbf16, #tpu.memory_space<vmem>>, %arg2: memref<8x128xbf16, #tpu.memory_space<vmem>>, %arg3: memref<128x384xbf16, #tpu.memory_space<vmem>>, %arg4: memref<1x384xf32, #tpu.memory_space<vmem>>, %arg5: memref<128x384xbf16, #tpu.memory_space<vmem>>, %arg6: memref<1x384xf32, #tpu.memory_space<vmem>>, %arg7: memref<128x384xbf16, #tpu.memory_space<vmem>>, %arg8: memref<1x384xf32, #tpu.memory_space<vmem>>, %arg9: memref<128x128xbf16, #tpu.memory_space<vmem>>, %arg10: memref<128x128xbf16, #tpu.memory_space<vmem>>, %arg11: memref<128x128xbf16, #tpu.memory_space<vmem>>, %arg12: memref<1x128xf32, #tpu.memory_space<vmem>>, %arg13: memref<8x128xf32, #tpu.memory_space<vmem>>) attributes {dimension_semantics = [], scalar_prefetch = 0 : i64, scratch_operands = 0 : i64, tpu.core_type = #tpu.core_type<tc>} {
    %c0 = arith.constant 0 : index
    %c0_0 = arith.constant 0 : index
    %0 = vector.load %arg0[%c0, %c0_0] : memref<8x128xbf16, #tpu.memory_space<vmem>>, vector<8x128xbf16>
    %c0_1 = arith.constant 0 : index
    %c0_2 = arith.constant 0 : index
    %1 = vector.load %arg3[%c0_1, %c0_2] : memref<128x384xbf16, #tpu.memory_space<vmem>>, vector<128x384xbf16>
    %cst = arith.constant dense<0.000000e+00> : vector<8x384xf32>
    %2 = tpu.matmul %0, %1, %cst {dimension_numbers = #tpu.dot_dimension_numbers<[1], [0], [0], [1], [0, 0, 1, 1], [], []>} : vector<8x128xbf16>, vector<128x384xbf16>, vector<8x384xf32> -> vector<8x384xf32>
    %c0_3 = arith.constant 0 : index
    %c0_4 = arith.constant 0 : index
    %3 = vector.load %arg4[%c0_3, %c0_4] : memref<1x384xf32, #tpu.memory_space<vmem>>, vector<1x384xf32>
    %4 = vector.broadcast %3 : vector<1x384xf32> to vector<8x384xf32>
    %5 = arith.addf %2, %4 : vector<8x384xf32>
    %6 = vector.extract_strided_slice %5 {offsets = [0, 0], sizes = [8, 128], strides = [1, 1]} : vector<8x384xf32> to vector<8x128xf32>
    %7 = arith.truncf %6 : vector<8x128xf32> to vector<8x128xbf16>
    %8 = vector.extract_strided_slice %5 {offsets = [0, 128], sizes = [8, 128], strides = [1, 1]} : vector<8x384xf32> to vector<8x128xf32>
    %9 = arith.truncf %8 : vector<8x128xf32> to vector<8x128xbf16>
    %10 = vector.extract_strided_slice %5 {offsets = [0, 256], sizes = [8, 128], strides = [1, 1]} : vector<8x384xf32> to vector<8x128xf32>
    %11 = arith.truncf %10 : vector<8x128xf32> to vector<8x128xbf16>
    %cst_5 = arith.constant dense<0.000000e+00> : vector<8x8xf32>
    %12 = tpu.matmul %7, %9, %cst_5 {dimension_numbers = #tpu.dot_dimension_numbers<[1], [1], [0], [0], [0, 0, 1, 0], [], []>} : vector<8x128xbf16>, vector<8x128xbf16>, vector<8x8xf32> -> vector<8x8xf32>
    %cst_6 = arith.constant dense<0xFF800000> : vector<8xf32>
    %13 = vector.multi_reduction <maximumf>, %12, %cst_6 [1] : vector<8x8xf32> to vector<8xf32>
    %14 = vector.shape_cast %13 : vector<8xf32> to vector<8x1xf32>
    %15 = vector.broadcast %14 : vector<8x1xf32> to vector<8x8xf32>
    %16 = arith.subf %12, %15 : vector<8x8xf32>
    %17 = math.exp %16 : vector<8x8xf32>
    %cst_7 = arith.constant dense<0.000000e+00> : vector<8xf32>
    %18 = vector.multi_reduction <add>, %17, %cst_7 [1] : vector<8x8xf32> to vector<8xf32>
    %19 = vector.shape_cast %18 : vector<8xf32> to vector<8x1xf32>
    %20 = tpu.reciprocal %19 {approx = true} : vector<8x1xf32> -> vector<8x1xf32>
    %21 = vector.broadcast %20 : vector<8x1xf32> to vector<8x8xf32>
    %22 = arith.mulf %17, %21 : vector<8x8xf32>
    %23 = arith.truncf %22 : vector<8x8xf32> to vector<8x8xbf16>
    %cst_8 = arith.constant dense<0.000000e+00> : vector<8x128xf32>
    %24 = tpu.matmul %23, %11, %cst_8 {dimension_numbers = #tpu.dot_dimension_numbers<[1], [0], [0], [1], [0, 0, 1, 1], [], []>} : vector<8x8xbf16>, vector<8x128xbf16>, vector<8x128xf32> -> vector<8x128xf32>
    %c0_9 = arith.constant 0 : index
    %c0_10 = arith.constant 0 : index
    %25 = vector.load %arg1[%c0_9, %c0_10] : memref<8x128xbf16, #tpu.memory_space<vmem>>, vector<8x128xbf16>
    %c0_11 = arith.constant 0 : index
    %c0_12 = arith.constant 0 : index
    %26 = vector.load %arg5[%c0_11, %c0_12] : memref<128x384xbf16, #tpu.memory_space<vmem>>, vector<128x384xbf16>
    %cst_13 = arith.constant dense<0.000000e+00> : vector<8x384xf32>
    %27 = tpu.matmul %25, %26, %cst_13 {dimension_numbers = #tpu.dot_dimension_numbers<[1], [0], [0], [1], [0, 0, 1, 1], [], []>} : vector<8x128xbf16>, vector<128x384xbf16>, vector<8x384xf32> -> vector<8x384xf32>
    %c0_14 = arith.constant 0 : index
    %c0_15 = arith.constant 0 : index
    %28 = vector.load %arg6[%c0_14, %c0_15] : memref<1x384xf32, #tpu.memory_space<vmem>>, vector<1x384xf32>
    %29 = vector.broadcast %28 : vector<1x384xf32> to vector<8x384xf32>
    %30 = arith.addf %27, %29 : vector<8x384xf32>
    %31 = vector.extract_strided_slice %30 {offsets = [0, 0], sizes = [8, 128], strides = [1, 1]} : vector<8x384xf32> to vector<8x128xf32>
    %32 = arith.truncf %31 : vector<8x128xf32> to vector<8x128xbf16>
    %33 = vector.extract_strided_slice %30 {offsets = [0, 128], sizes = [8, 128], strides = [1, 1]} : vector<8x384xf32> to vector<8x128xf32>
    %34 = arith.truncf %33 : vector<8x128xf32> to vector<8x128xbf16>
    %35 = vector.extract_strided_slice %30 {offsets = [0, 256], sizes = [8, 128], strides = [1, 1]} : vector<8x384xf32> to vector<8x128xf32>
    %36 = arith.truncf %35 : vector<8x128xf32> to vector<8x128xbf16>
    %cst_16 = arith.constant dense<0.000000e+00> : vector<8x8xf32>
    %37 = tpu.matmul %32, %34, %cst_16 {dimension_numbers = #tpu.dot_dimension_numbers<[1], [1], [0], [0], [0, 0, 1, 0], [], []>} : vector<8x128xbf16>, vector<8x128xbf16>, vector<8x8xf32> -> vector<8x8xf32>
    %cst_17 = arith.constant dense<0xFF800000> : vector<8xf32>
    %38 = vector.multi_reduction <maximumf>, %37, %cst_17 [1] : vector<8x8xf32> to vector<8xf32>
    %39 = vector.shape_cast %38 : vector<8xf32> to vector<8x1xf32>
    %40 = vector.broadcast %39 : vector<8x1xf32> to vector<8x8xf32>
    %41 = arith.subf %37, %40 : vector<8x8xf32>
    %42 = math.exp %41 : vector<8x8xf32>
    %cst_18 = arith.constant dense<0.000000e+00> : vector<8xf32>
    %43 = vector.multi_reduction <add>, %42, %cst_18 [1] : vector<8x8xf32> to vector<8xf32>
    %44 = vector.shape_cast %43 : vector<8xf32> to vector<8x1xf32>
    %45 = tpu.reciprocal %44 {approx = true} : vector<8x1xf32> -> vector<8x1xf32>
    %46 = vector.broadcast %45 : vector<8x1xf32> to vector<8x8xf32>
    %47 = arith.mulf %42, %46 : vector<8x8xf32>
    %48 = arith.truncf %47 : vector<8x8xf32> to vector<8x8xbf16>
    %cst_19 = arith.constant dense<0.000000e+00> : vector<8x128xf32>
    %49 = tpu.matmul %48, %36, %cst_19 {dimension_numbers = #tpu.dot_dimension_numbers<[1], [0], [0], [1], [0, 0, 1, 1], [], []>} : vector<8x8xbf16>, vector<8x128xbf16>, vector<8x128xf32> -> vector<8x128xf32>
    %c0_20 = arith.constant 0 : index
    %c0_21 = arith.constant 0 : index
    %50 = vector.load %arg2[%c0_20, %c0_21] : memref<8x128xbf16, #tpu.memory_space<vmem>>, vector<8x128xbf16>
    %c0_22 = arith.constant 0 : index
    %c0_23 = arith.constant 0 : index
    %51 = vector.load %arg7[%c0_22, %c0_23] : memref<128x384xbf16, #tpu.memory_space<vmem>>, vector<128x384xbf16>
    %cst_24 = arith.constant dense<0.000000e+00> : vector<8x384xf32>
    %52 = tpu.matmul %50, %51, %cst_24 {dimension_numbers = #tpu.dot_dimension_numbers<[1], [0], [0], [1], [0, 0, 1, 1], [], []>} : vector<8x128xbf16>, vector<128x384xbf16>, vector<8x384xf32> -> vector<8x384xf32>
    %c0_25 = arith.constant 0 : index
    %c0_26 = arith.constant 0 : index
    %53 = vector.load %arg8[%c0_25, %c0_26] : memref<1x384xf32, #tpu.memory_space<vmem>>, vector<1x384xf32>
    %54 = vector.broadcast %53 : vector<1x384xf32> to vector<8x384xf32>
    %55 = arith.addf %52, %54 : vector<8x384xf32>
    %56 = vector.extract_strided_slice %55 {offsets = [0, 0], sizes = [8, 128], strides = [1, 1]} : vector<8x384xf32> to vector<8x128xf32>
    %57 = arith.truncf %56 : vector<8x128xf32> to vector<8x128xbf16>
    %58 = vector.extract_strided_slice %55 {offsets = [0, 128], sizes = [8, 128], strides = [1, 1]} : vector<8x384xf32> to vector<8x128xf32>
    %59 = arith.truncf %58 : vector<8x128xf32> to vector<8x128xbf16>
    %60 = vector.extract_strided_slice %55 {offsets = [0, 256], sizes = [8, 128], strides = [1, 1]} : vector<8x384xf32> to vector<8x128xf32>
    %61 = arith.truncf %60 : vector<8x128xf32> to vector<8x128xbf16>
    %cst_27 = arith.constant dense<0.000000e+00> : vector<8x8xf32>
    %62 = tpu.matmul %57, %59, %cst_27 {dimension_numbers = #tpu.dot_dimension_numbers<[1], [1], [0], [0], [0, 0, 1, 0], [], []>} : vector<8x128xbf16>, vector<8x128xbf16>, vector<8x8xf32> -> vector<8x8xf32>
    %cst_28 = arith.constant dense<0xFF800000> : vector<8xf32>
    %63 = vector.multi_reduction <maximumf>, %62, %cst_28 [1] : vector<8x8xf32> to vector<8xf32>
    %64 = vector.shape_cast %63 : vector<8xf32> to vector<8x1xf32>
    %65 = vector.broadcast %64 : vector<8x1xf32> to vector<8x8xf32>
    %66 = arith.subf %62, %65 : vector<8x8xf32>
    %67 = math.exp %66 : vector<8x8xf32>
    %cst_29 = arith.constant dense<0.000000e+00> : vector<8xf32>
    %68 = vector.multi_reduction <add>, %67, %cst_29 [1] : vector<8x8xf32> to vector<8xf32>
    %69 = vector.shape_cast %68 : vector<8xf32> to vector<8x1xf32>
    %70 = tpu.reciprocal %69 {approx = true} : vector<8x1xf32> -> vector<8x1xf32>
    %71 = vector.broadcast %70 : vector<8x1xf32> to vector<8x8xf32>
    %72 = arith.mulf %67, %71 : vector<8x8xf32>
    %73 = arith.truncf %72 : vector<8x8xf32> to vector<8x8xbf16>
    %cst_30 = arith.constant dense<0.000000e+00> : vector<8x128xf32>
    %74 = tpu.matmul %73, %61, %cst_30 {dimension_numbers = #tpu.dot_dimension_numbers<[1], [0], [0], [1], [0, 0, 1, 1], [], []>} : vector<8x8xbf16>, vector<8x128xbf16>, vector<8x128xf32> -> vector<8x128xf32>
    %75 = arith.truncf %24 : vector<8x128xf32> to vector<8x128xbf16>
    %c0_31 = arith.constant 0 : index
    %c0_32 = arith.constant 0 : index
    %76 = vector.load %arg9[%c0_31, %c0_32] : memref<128x128xbf16, #tpu.memory_space<vmem>>, vector<128x128xbf16>
    %cst_33 = arith.constant dense<0.000000e+00> : vector<8x128xf32>
    %77 = tpu.matmul %75, %76, %cst_33 {dimension_numbers = #tpu.dot_dimension_numbers<[1], [0], [0], [1], [0, 0, 1, 1], [], []>} : vector<8x128xbf16>, vector<128x128xbf16>, vector<8x128xf32> -> vector<8x128xf32>
    %78 = arith.truncf %49 : vector<8x128xf32> to vector<8x128xbf16>
    %c0_34 = arith.constant 0 : index
    %c0_35 = arith.constant 0 : index
    %79 = vector.load %arg10[%c0_34, %c0_35] : memref<128x128xbf16, #tpu.memory_space<vmem>>, vector<128x128xbf16>
    %cst_36 = arith.constant dense<0.000000e+00> : vector<8x128xf32>
    %80 = tpu.matmul %78, %79, %cst_36 {dimension_numbers = #tpu.dot_dimension_numbers<[1], [0], [0], [1], [0, 0, 1, 1], [], []>} : vector<8x128xbf16>, vector<128x128xbf16>, vector<8x128xf32> -> vector<8x128xf32>
    %81 = arith.addf %77, %80 : vector<8x128xf32>
    %82 = arith.truncf %74 : vector<8x128xf32> to vector<8x128xbf16>
    %c0_37 = arith.constant 0 : index
    %c0_38 = arith.constant 0 : index
    %83 = vector.load %arg11[%c0_37, %c0_38] : memref<128x128xbf16, #tpu.memory_space<vmem>>, vector<128x128xbf16>
    %cst_39 = arith.constant dense<0.000000e+00> : vector<8x128xf32>
    %84 = tpu.matmul %82, %83, %cst_39 {dimension_numbers = #tpu.dot_dimension_numbers<[1], [0], [0], [1], [0, 0, 1, 1], [], []>} : vector<8x128xbf16>, vector<128x128xbf16>, vector<8x128xf32> -> vector<8x128xf32>
    %85 = arith.addf %81, %84 : vector<8x128xf32>
    %c0_40 = arith.constant 0 : index
    %c0_41 = arith.constant 0 : index
    %86 = vector.load %arg12[%c0_40, %c0_41] : memref<1x128xf32, #tpu.memory_space<vmem>>, vector<1x128xf32>
    %87 = vector.broadcast %86 : vector<1x128xf32> to vector<8x128xf32>
    %88 = arith.addf %85, %87 : vector<8x128xf32>
    %c0_42 = arith.constant 0 : index
    %c0_43 = arith.constant 0 : index
    %89 = vector.load %arg13[%c0_42, %c0_43] : memref<8x128xf32, #tpu.memory_space<vmem>>, vector<8x128xf32>
    tpu.vector_store %arg13[%c0_42, %c0_43], %88 {strides = array<i32>} : memref<8x128xf32, #tpu.memory_space<vmem>>, vector<8x128xf32>,
    return
  }
}

</mosaic_0001>

<llo_original>
// kernel: tpu_custom_call.1
$region0: #{tpu_custom_call.1}
  #allocation0 [shape = 'u32[]', space=smem, size = 0x4, offset = 0x4, fixed_abs, tag = 'smem constant byte address 0x4 - core index']
  #allocation1 [shape = 'u32[144,128]{1,0:T(1,128)}', space=vmem, size = 0x12000, scoped, tag = 'internal scratch']
  %s0 = inlined_call_operand.hbm [shape: bf16[8,128], index: 0, kind: input, shape index: {}]
  %s1 = inlined_call_operand.hbm [shape: bf16[8,128], index: 1, kind: input, shape index: {}]
  %s2 = inlined_call_operand.vmem [shape: bf16[8,128], index: 2, kind: input, shape index: {}]
  %s3 = inlined_call_operand.hbm [shape: bf16[128,384], index: 3, kind: input, shape index: {}]
  %s4 = inlined_call_operand.vmem [shape: f32[1,384], index: 4, kind: input, shape index: {}]
  %s5 = inlined_call_operand.hbm [shape: bf16[128,384], index: 5, kind: input, shape index: {}]
  %s6 = inlined_call_operand.vmem [shape: f32[1,384], index: 6, kind: input, shape index: {}]
  %s7 = inlined_call_operand.hbm [shape: bf16[128,384], index: 7, kind: input, shape index: {}]
  %s8 = inlined_call_operand.vmem [shape: f32[1,384], index: 8, kind: input, shape index: {}]
  %s9 = inlined_call_operand.hbm [shape: bf16[128,128], index: 9, kind: input, shape index: {}]
  %s10 = inlined_call_operand.hbm [shape: bf16[128,128], index: 10, kind: input, shape index: {}]
  %s11 = inlined_call_operand.hbm [shape: bf16[128,128], index: 11, kind: input, shape index: {}]
  %s12 = inlined_call_operand.vmem [shape: f32[1,128], index: 12, kind: input, shape index: {}]
  %s13 = inlined_call_operand.hbm [shape: f32[8,128], index: 13, kind: output, shape index: {}]
  %s14 = sld [smem:[#allocation0]]
  $region94: #{tpu_custom_call.1} parent=0
    _
  %s16 = ssub.s32 1, %s14
  %s17 = scalar_select 0, %s16, %s14
  $region1: #{tpu_custom_call.1} parent=0
    #allocation2 [shape = 'u8[2048]{0}', space=vmem, size = 0x800, scoped, tag = 'input window, operand 0, single buffered']
    #allocation3 [shape = 's32[1]{0}', space=sflag, size = 0x4, scoped, tag = 'scoped memory for tpu_custom_call.1']
    #allocation4 [shape = 's32[1]{0}', space=sflag, size = 0x4, scoped, tag = 'scoped memory for tpu_custom_call.1']
    #allocation5 [shape = 'u8[2048]{0}', space=vmem, size = 0x800, scoped, tag = 'input window, operand 1, single buffered']
    #allocation6 [shape = 's32[1]{0}', space=sflag, size = 0x4, scoped, tag = 'scoped memory for tpu_custom_call.1']
    #allocation7 [shape = 'u8[98304]{0}', space=vmem, size = 0x18000, scoped, tag = 'input window, operand 3, single buffered']
    #allocation8 [shape = 'u8[98304]{0}', space=vmem, size = 0x18000, scoped, tag = 'input window, operand 5, single buffered']
    #allocation9 [shape = 's32[1]{0}', space=sflag, size = 0x4, scoped, tag = 'scoped memory for tpu_custom_call.1']
    #allocation10 [shape = 'u8[98304]{0}', space=vmem, size = 0x18000, scoped, tag = 'input window, operand 7, single buffered']
    #allocation11 [shape = 'u8[32768]{0}', space=vmem, size = 0x8000, scoped, tag = 'input window, operand 9, single buffered']
    #allocation12 [shape = 's32[1]{0}', space=sflag, size = 0x4, scoped, tag = 'scoped memory for tpu_custom_call.1']
    #allocation13 [shape = 'u8[32768]{0}', space=vmem, size = 0x8000, scoped, tag = 'input window, operand 10, single buffered']
    #allocation14 [shape = 'u8[32768]{0}', space=vmem, size = 0x8000, scoped, tag = 'input window, operand 11, single buffered']
    #allocation15 [shape = 's32[1]{0}', space=sflag, size = 0x4, scoped, tag = 'scoped memory for tpu_custom_call.1']
    #allocation16 [shape = 'u8[4096]{0}', space=vmem, size = 0x1000, scoped, tag = 'output window, operand 0, single buffered']
    %18 = vsyncpa [#allocation3], 0
    %19 = vsyncpa [#allocation6], 0
    %20 = vsyncpa [#allocation9], 0
    %21 = vsyncpa [#allocation12], 0
    %22 = vsyncpa [#allocation15], 0
    %23 = vsyncpa [#allocation4], 0
    // Predicated region
    $region2: #{tpu_custom_call.1} parent=1 // pred_check
      _
    $region3: #{tpu_custom_call.1} parent=1 // pred_check_branch
      %25 = sbr.rel (0) target = $region5
    $region4: #{tpu_custom_call.1} parent=1 // pred_region
      %s27 = ssub.s32 64, 64
      %28 = vsyncadd [#allocation3], %s27
      %s30 = sshll.u32 [#allocation2], 4
      %s31 = int_to_ptr.vmem [resolvable:$true] %s30
      %33 = dma.hbm_to_vmem [thread:$0]  %s0, 64, %s31, [#allocation3]
    $region5: #{tpu_custom_call.1} parent=1 // pred_fallthru
      _
    // Predicated region
    $region6: #{tpu_custom_call.1} parent=1 // pred_check
      _
    $region7: #{tpu_custom_call.1} parent=1 // pred_check_branch
      %35 = sbr.rel (0) target = $region9
    $region8: #{tpu_custom_call.1} parent=1 // pred_region
      %s37 = ssub.s32 64, 64
      %38 = vsyncadd [#allocation6], %s37
      %s40 = sshll.u32 [#allocation5], 4
      %s41 = int_to_ptr.vmem [resolvable:$true] %s40
      %43 = dma.hbm_to_vmem [thread:$0]  %s1, 64, %s41, [#allocation6]
    $region9: #{tpu_custom_call.1} parent=1 // pred_fallthru
      _
    // Predicated region
    $region10: #{tpu_custom_call.1} parent=1 // pred_check
      _
    $region11: #{tpu_custom_call.1} parent=1 // pred_check_branch
      %45 = sbr.rel (0) target = $region13
    $region12: #{tpu_custom_call.1} parent=1 // pred_region
      _
    $region13: #{tpu_custom_call.1} parent=1 // pred_fallthru
      _
    // Predicated region
    $region14: #{tpu_custom_call.1} parent=1 // pred_check
      _
    $region15: #{tpu_custom_call.1} parent=1 // pred_check_branch
      %47 = sbr.rel (0) target = $region17
    $region16: #{tpu_custom_call.1} parent=1 // pred_region
      %s49 = ssub.s32 3072, 3072
      %50 = vsyncadd [#allocation6], %s49
      %s51 = sshll.u32 [#allocation7], 4
      %s52 = int_to_ptr.vmem [resolvable:$true] %s51
      %57 = dma.hbm_to_vmem [thread:$0]  %s3, 3072, %s52, [#allocation6], 192, 192, 12
    $region17: #{tpu_custom_call.1} parent=1 // pred_fallthru
      _
    // Predicated region
    $region18: #{tpu_custom_call.1} parent=1 // pred_check
      _
    $region19: #{tpu_custom_call.1} parent=1 // pred_check_branch
      %59 = sbr.rel (0) target = $region21
    $region20: #{tpu_custom_call.1} parent=1 // pred_region
      _
    $region21: #{tpu_custom_call.1} parent=1 // pred_fallthru
      _
    // Predicated region
    $region22: #{tpu_custom_call.1} parent=1 // pred_check
      _
    $region23: #{tpu_custom_call.1} parent=1 // pred_check_branch
      %61 = sbr.rel (0) target = $region25
    $region24: #{tpu_custom_call.1} parent=1 // pred_region
      %s63 = ssub.s32 3072, 3072
      %64 = vsyncadd [#allocation9], %s63
      %s65 = sshll.u32 [#allocation8], 4
      %s66 = int_to_ptr.vmem [resolvable:$true] %s65
      %71 = dma.hbm_to_vmem [thread:$0]  %s5, 3072, %s66, [#allocation9], 192, 192, 12
    $region25: #{tpu_custom_call.1} parent=1 // pred_fallthru
      _
    // Predicated region
    $region26: #{tpu_custom_call.1} parent=1 // pred_check
      _
    $region27: #{tpu_custom_call.1} parent=1 // pred_check_branch
      %73 = sbr.rel (0) target = $region29
    $region28: #{tpu_custom_call.1} parent=1 // pred_region
      _
    $region29: #{tpu_custom_call.1} parent=1 // pred_fallthru
      _
    // Predicated region
    $region30: #{tpu_custom_call.1} parent=1 // pred_check
      _
    $region31: #{tpu_custom_call.1} parent=1 // pred_check_branch
      %75 = sbr.rel (0) target = $region33
    $region32: #{tpu_custom_call.1} parent=1 // pred_region
      %s77 = ssub.s32 3072, 3072
      %78 = vsyncadd [#allocation9], %s77
      %s79 = sshll.u32 [#allocation10], 4
      %s80 = int_to_ptr.vmem [resolvable:$true] %s79
      %85 = dma.hbm_to_vmem [thread:$0]  %s7, 3072, %s80, [#allocation9], 192, 192, 12
    $region33: #{tpu_custom_call.1} parent=1 // pred_fallthru
      _
    // Predicated region
    $region34: #{tpu_custom_call.1} parent=1 // pred_check
      _
    $region35: #{tpu_custom_call.1} parent=1 // pred_check_branch
      %87 = sbr.rel (0) target = $region37
    $region36: #{tpu_custom_call.1} parent=1 // pred_region
      _
    $region37: #{tpu_custom_call.1} parent=1 // pred_fallthru
      _
    // Predicated region
    $region38: #{tpu_custom_call.1} parent=1 // pred_check
      _
    $region39: #{tpu_custom_call.1} parent=1 // pred_check_branch
      %89 = sbr.rel (0) target = $region41
    $region40: #{tpu_custom_call.1} parent=1 // pred_region
      %s91 = ssub.s32 1024, 1024
      %92 = vsyncadd [#allocation12], %s91
      %s93 = sshll.u32 [#allocation11], 4
      %s94 = int_to_ptr.vmem [resolvable:$true] %s93
      %99 = dma.hbm_to_vmem [thread:$0]  %s9, 1024, %s94, [#allocation12], 64, 64, 4
    $region41: #{tpu_custom_call.1} parent=1 // pred_fallthru
      _
    // Predicated region
    $region42: #{tpu_custom_call.1} parent=1 // pred_check
      _
    $region43: #{tpu_custom_call.1} parent=1 // pred_check_branch
      %101 = sbr.rel (0) target = $region45
    $region44: #{tpu_custom_call.1} parent=1 // pred_region
      %s103 = ssub.s32 1024, 1024
      %104 = vsyncadd [#allocation12], %s103
      %s105 = sshll.u32 [#allocation13], 4
      %s106 = int_to_ptr.vmem [resolvable:$true] %s105
      %111 = dma.hbm_to_vmem [thread:$0]  %s10, 1024, %s106, [#allocation12], 64, 64, 4
    $region45: #{tpu_custom_call.1} parent=1 // pred_fallthru
      _
    // Predicated region
    $region46: #{tpu_custom_call.1} parent=1 // pred_check
      _
    $region47: #{tpu_custom_call.1} parent=1 // pred_check_branch
      %113 = sbr.rel (0) target = $region49
    $region48: #{tpu_custom_call.1} parent=1 // pred_region
      %s115 = ssub.s32 1024, 1024
      %116 = vsyncadd [#allocation15], %s115
      %s117 = sshll.u32 [#allocation14], 4
      %s118 = int_to_ptr.vmem [resolvable:$true] %s117
      %123 = dma.hbm_to_vmem [thread:$0]  %s11, 1024, %s118, [#allocation15], 64, 64, 4
    $region49: #{tpu_custom_call.1} parent=1 // pred_fallthru
      _
    // Predicated region
    $region50: #{tpu_custom_call.1} parent=1 // pred_check
      _
    $region51: #{tpu_custom_call.1} parent=1 // pred_check_branch
      %125 = sbr.rel (0) target = $region53
    $region52: #{tpu_custom_call.1} parent=1 // pred_region
      _
    $region53: #{tpu_custom_call.1} parent=1 // pred_fallthru
      _
    // Predicated region
    $region54: #{tpu_custom_call.1} parent=1 // pred_check
      _
    $region55: #{tpu_custom_call.1} parent=1 // pred_check_branch
      %127 = sbr.rel (0) target = $region57
    $region56: #{tpu_custom_call.1} parent=1 // pred_region
      %128 = dma.done [#allocation3], 64
    $region57: #{tpu_custom_call.1} parent=1 // pred_fallthru
      _
    // Predicated region
    $region58: #{tpu_custom_call.1} parent=1 // pred_check
      _
    $region59: #{tpu_custom_call.1} parent=1 // pred_check_branch
      %130 = sbr.rel (0) target = $region61
    $region60: #{tpu_custom_call.1} parent=1 // pred_region
      %131 = dma.done [#allocation6], 64
    $region61: #{tpu_custom_call.1} parent=1 // pred_fallthru
      _
    // Predicated region
    $region62: #{tpu_custom_call.1} parent=1 // pred_check
      _
    $region63: #{tpu_custom_call.1} parent=1 // pred_check_branch
      %133 = sbr.rel (0) target = $region65
    $region64: #{tpu_custom_call.1} parent=1 // pred_region
      %134 = dma.done [#allocation6], 3072
    $region65: #{tpu_custom_call.1} parent=1 // pred_fallthru
      _
    // Predicated region
    $region66: #{tpu_custom_call.1} parent=1 // pred_check
      _
    $region67: #{tpu_custom_call.1} parent=1 // pred_check_branch
      %136 = sbr.rel (0) target = $region69
    $region68: #{tpu_custom_call.1} parent=1 // pred_region
      %137 = dma.done [#allocation9], 3072
    $region69: #{tpu_custom_call.1} parent=1 // pred_fallthru
      _
    // Predicated region
    $region70: #{tpu_custom_call.1} parent=1 // pred_check
      _
    $region71: #{tpu_custom_call.1} parent=1 // pred_check_branch
      %139 = sbr.rel (0) target = $region73
    $region72: #{tpu_custom_call.1} parent=1 // pred_region
      %140 = dma.done [#allocation9], 3072
    $region73: #{tpu_custom_call.1} parent=1 // pred_fallthru
      _
    // Predicated region
    $region74: #{tpu_custom_call.1} parent=1 // pred_check
      _
    $region75: #{tpu_custom_call.1} parent=1 // pred_check_branch
      %142 = sbr.rel (0) target = $region77
    $region76: #{tpu_custom_call.1} parent=1 // pred_region
      %143 = dma.done [#allocation12], 1024
    $region77: #{tpu_custom_call.1} parent=1 // pred_fallthru
      _
    // Predicated region
    $region78: #{tpu_custom_call.1} parent=1 // pred_check
      _
    $region79: #{tpu_custom_call.1} parent=1 // pred_check_branch
      %145 = sbr.rel (0) target = $region81
    $region80: #{tpu_custom_call.1} parent=1 // pred_region
      %146 = dma.done [#allocation12], 1024
    $region81: #{tpu_custom_call.1} parent=1 // pred_fallthru
      _
    // Predicated region
    $region82: #{tpu_custom_call.1} parent=1 // pred_check
      _
    $region83: #{tpu_custom_call.1} parent=1 // pred_check_branch
      %148 = sbr.rel (0) target = $region85
    $region84: #{tpu_custom_call.1} parent=1 // pred_region
      %149 = dma.done [#allocation15], 1024
    $region85: #{tpu_custom_call.1} parent=1 // pred_fallthru
      _
    %v151 = vld [vmem:[#allocation2] sm:$0xf]
    %v152 = vld [vmem:[#allocation7] sm:$0xff]
    %v153 = vld [vmem:[#allocation7 + $0x8] sm:$0xf]
    %v154 = vld [vmem:[#allocation7 + $0xc] sm:$0xff]
    %v155 = vld [vmem:[#allocation7 + $0x14] sm:$0xf]
    %v156 = vld [vmem:[#allocation7 + $0x18] sm:$0xff]
    %v157 = vld [vmem:[#allocation7 + $0x20] sm:$0xf]
    %v158 = vld [vmem:[#allocation7 + $0x24] sm:$0xff]
    %v159 = vld [vmem:[#allocation7 + $0x2c] sm:$0xf]
    %v160 = vld [vmem:[#allocation7 + $0x30] sm:$0xff]
    %v161 = vld [vmem:[#allocation7 + $0x38] sm:$0xf]
    %v162 = vld [vmem:[#allocation7 + $0x3c] sm:$0xff]
    %v163 = vld [vmem:[#allocation7 + $0x44] sm:$0xf]
    %v164 = vld [vmem:[#allocation7 + $0x48] sm:$0xff]
    %v165 = vld [vmem:[#allocation7 + $0x50] sm:$0xf]
    %v166 = vld [vmem:[#allocation7 + $0x54] sm:$0xff]
    %v167 = vld [vmem:[#allocation7 + $0x5c] sm:$0xf]
    %v168 = vld [vmem:[#allocation7 + $0x60] sm:$0xff]
    %v169 = vld [vmem:[#allocation7 + $0x68] sm:$0xf]
    %v170 = vld [vmem:[#allocation7 + $0x6c] sm:$0xff]
    %v171 = vld [vmem:[#allocation7 + $0x74] sm:$0xf]
    %v172 = vld [vmem:[#allocation7 + $0x78] sm:$0xff]
    %v173 = vld [vmem:[#allocation7 + $0x80] sm:$0xf]
    %v174 = vld [vmem:[#allocation7 + $0x84] sm:$0xff]
    %v175 = vld [vmem:[#allocation7 + $0x8c] sm:$0xf]
    %v176 = vld [vmem:[#allocation7 + $0x90] sm:$0xff]
    %v177 = vld [vmem:[#allocation7 + $0x98] sm:$0xf]
    %v178 = vld [vmem:[#allocation7 + $0x9c] sm:$0xff]
    %v179 = vld [vmem:[#allocation7 + $0xa4] sm:$0xf]
    %v180 = vld [vmem:[#allocation7 + $0xa8] sm:$0xff]
    %v181 = vld [vmem:[#allocation7 + $0xb0] sm:$0xf]
    %v182 = vld [vmem:[#allocation7 + $0xb4] sm:$0xff]
    %v183 = vld [vmem:[#allocation7 + $0xbc] sm:$0xf]
    %v184 = vld [vmem:[%s4] sm:$0x7]
    %v186 = vlaneseq
    %v187 = vshrl.u32 %v186, 7
    %v188 = vsub.s32 0, %v187
    %v189 = vrot.slane %v184, %v188
    %v190 = vlaneseq
    %v191 = vshrl.u32 %v190, 7
    %v192 = vsub.s32 1, %v191
    %v193 = vrot.slane %v184, %v192
    %v194 = vlaneseq
    %v195 = vshrl.u32 %v194, 7
    %v196 = vsub.s32 2, %v195
    %v197 = vrot.slane %v184, %v196
    %v233 = vunpack.c.l.b16 %v152
    %v234 = vunpack.c.h.b16 %v152
    %v235 = vunpack.c.l.b16 %v153
    %v236 = vunpack.c.l.b16 %v154
    %v237 = vunpack.c.h.b16 %v154
    %v238 = vunpack.c.l.b16 %v155
    %v239 = vunpack.c.l.b16 %v156
    %v240 = vunpack.c.h.b16 %v156
    %v241 = vunpack.c.l.b16 %v157
    %v242 = vunpack.c.l.b16 %v158
    %v243 = vunpack.c.h.b16 %v158
    %v244 = vunpack.c.l.b16 %v159
    %v245 = vunpack.c.l.b16 %v160
    %v246 = vunpack.c.h.b16 %v160
    %v247 = vunpack.c.l.b16 %v161
    %v248 = vunpack.c.l.b16 %v162
    %v249 = vunpack.c.h.b16 %v162
    %v250 = vunpack.c.l.b16 %v163
    %v251 = vunpack.c.l.b16 %v164
    %v252 = vunpack.c.h.b16 %v164
    %v253 = vunpack.c.l.b16 %v165
    %v254 = vunpack.c.l.b16 %v166
    %v255 = vunpack.c.h.b16 %v166
    %v256 = vunpack.c.l.b16 %v167
    %v257 = vunpack.c.l.b16 %v168
    %v258 = vunpack.c.h.b16 %v168
    %v259 = vunpack.c.l.b16 %v169
    %v260 = vunpack.c.l.b16 %v170
    %v261 = vunpack.c.h.b16 %v170
    %v262 = vunpack.c.l.b16 %v171
    %v263 = vunpack.c.l.b16 %v172
    %v264 = vunpack.c.h.b16 %v172
    %v265 = vunpack.c.l.b16 %v173
    %v266 = vunpack.c.l.b16 %v174
    %v267 = vunpack.c.h.b16 %v174
    %v268 = vunpack.c.l.b16 %v175
    %v269 = vunpack.c.l.b16 %v176
    %v270 = vunpack.c.h.b16 %v176
    %v271 = vunpack.c.l.b16 %v177
    %v272 = vunpack.c.l.b16 %v178
    %v273 = vunpack.c.h.b16 %v178
    %v274 = vunpack.c.l.b16 %v179
    %v275 = vunpack.c.l.b16 %v180
    %v276 = vunpack.c.h.b16 %v180
    %v277 = vunpack.c.l.b16 %v181
    %v278 = vunpack.c.l.b16 %v182
    %v279 = vunpack.c.h.b16 %v182
    %v280 = vunpack.c.l.b16 %v183
    %v281 = vpack.c.b16 %v236, %v233
    %v282 = vpack.c.b16 %v237, %v234
    %v283 = vpack.c.b16 %v238, %v235
    %v284 = vpack.c.b16 %v242, %v239
    %v285 = vpack.c.b16 %v243, %v240
    %v286 = vpack.c.b16 %v244, %v241
    %v287 = vpack.c.b16 %v248, %v245
    %v288 = vpack.c.b16 %v249, %v246
    %v289 = vpack.c.b16 %v250, %v247
    %v290 = vpack.c.b16 %v254, %v251
    %v291 = vpack.c.b16 %v255, %v252
    %v292 = vpack.c.b16 %v256, %v253
    %v293 = vpack.c.b16 %v260, %v257
    %v294 = vpack.c.b16 %v261, %v258
    %v295 = vpack.c.b16 %v262, %v259
    %v296 = vpack.c.b16 %v266, %v263
    %v297 = vpack.c.b16 %v267, %v264
    %v298 = vpack.c.b16 %v268, %v265
    %v299 = vpack.c.b16 %v272, %v269
    %v300 = vpack.c.b16 %v273, %v270
    %v301 = vpack.c.b16 %v274, %v271
    %v302 = vpack.c.b16 %v278, %v275
    %v303 = vpack.c.b16 %v279, %v276
    %v304 = vpack.c.b16 %v280, %v277
    %329 = vmatprep.subr.bf16.mxu0 %v282
    %330 = vmatpush1.bf16.msra.mxu0 %v281
    %331 = vmatprep.subr.bf16.mxu0 %v285
    %332 = vmatpush1.bf16.msra.mxu0 %v284
    %333 = vmatprep.subr.bf16.mxu0 %v288
    %334 = vmatpush1.bf16.msra.mxu0 %v287
    %335 = vmatprep.subr.bf16.mxu0 %v291
    %336 = vmatpush1.bf16.msra.mxu0 %v290
    %337 = vmatprep.subr.bf16.mxu0 %v294
    %338 = vmatpush1.bf16.msra.mxu0 %v293
    %339 = vmatprep.subr.bf16.mxu0 %v297
    %340 = vmatpush1.bf16.msra.mxu0 %v296
    %341 = vmatprep.subr.bf16.mxu0 %v300
    %342 = vmatpush1.bf16.msra.mxu0 %v299
    %343 = vmatprep.subr.bf16.mxu0 %v303
    %344 = vmatpush1.bf16.msra.mxu0 %v302
    %345 = vmatprep.subr.bf16.mxu0 0
    %346 = vmatpush1.bf16.msra.mxu0 0
    %347 = vmatprep.subr.bf16.mxu0 0
    %348 = vmatpush1.bf16.msra.mxu0 0
    %349 = vmatprep.subr.bf16.mxu0 0
    %350 = vmatpush1.bf16.msra.mxu0 0
    %351 = vmatprep.subr.bf16.mxu0 0
    %352 = vmatpush1.bf16.msra.mxu0 0
    %353 = vmatprep.subr.bf16.mxu0 0
    %354 = vmatpush1.bf16.msra.mxu0 0
    %355 = vmatprep.subr.bf16.mxu0 0
    %356 = vmatpush1.bf16.msra.mxu0 0
    %357 = vmatprep.subr.bf16.mxu0 0
    %358 = vmatpush1.bf16.msra.mxu0 0
    %359 = vmatprep.subr.bf16.mxu0 0
    %360 = vmatpush1.bf16.msra.mxu0 0
    %361 = vmatprep.mubr.bf16.mxu0 0
    %362 = vmatmul.mubr.bf16.gmra.mrb[0].mxu0 %v151
    %v363 = vpop.f32.mrb[0].mxu0
    %v364 = vadd.f32 %v189, %v363
    %v365 = vpop.f32.mrb[0].mxu0
    %v366 = vadd.f32 %v193, %v365
    %v367 = vpop.f32.mrb[0].mxu0
    %v368 = vpop.f32.mrb[0].mxu0
    %369 = vdwg.mxu0
    %370 = vmatprep.subr.bf16.mxu0 0
    %371 = vmatpush1.bf16.msra.mxu0 %v283
    %372 = vmatprep.subr.bf16.mxu0 0
    %373 = vmatpush1.bf16.msra.mxu0 %v286
    %374 = vmatprep.subr.bf16.mxu0 0
    %375 = vmatpush1.bf16.msra.mxu0 %v289
    %376 = vmatprep.subr.bf16.mxu0 0
    %377 = vmatpush1.bf16.msra.mxu0 %v292
    %378 = vmatprep.subr.bf16.mxu0 0
    %379 = vmatpush1.bf16.msra.mxu0 %v295
    %380 = vmatprep.subr.bf16.mxu0 0
    %381 = vmatpush1.bf16.msra.mxu0 %v298
    %382 = vmatprep.subr.bf16.mxu0 0
    %383 = vmatpush1.bf16.msra.mxu0 %v301
    %384 = vmatprep.subr.bf16.mxu0 0
    %385 = vmatpush1.bf16.msra.mxu0 %v304
    %386 = vmatprep.subr.bf16.mxu0 0
    %387 = vmatpush1.bf16.msra.mxu0 0
    %388 = vmatprep.subr.bf16.mxu0 0
    %389 = vmatpush1.bf16.msra.mxu0 0
    %390 = vmatprep.subr.bf16.mxu0 0
    %391 = vmatpush1.bf16.msra.mxu0 0
    %392 = vmatprep.subr.bf16.mxu0 0
    %393 = vmatpush1.bf16.msra.mxu0 0
    %394 = vmatprep.subr.bf16.mxu0 0
    %395 = vmatpush1.bf16.msra.mxu0 0
    %396 = vmatprep.subr.bf16.mxu0 0
    %397 = vmatpush1.bf16.msra.mxu0 0
    %398 = vmatprep.subr.bf16.mxu0 0
    %399 = vmatpush1.bf16.msra.mxu0 0
    %400 = vmatprep.subr.bf16.mxu0 0
    %401 = vmatpush1.bf16.msra.mxu0 0
    %402 = vmatprep.mubr.bf16.mxu0 0
    %403 = vmatmul.mubr.bf16.gmra.mrb[0].mxu0 %v151
    %v404 = vpop.f32.mrb[0].mxu0
    %v405 = vadd.f32 %v197, %v404
    %v406 = vpop.f32.mrb[0].mxu0
    %v407 = vpop.f32.mrb[0].mxu0
    %v408 = vpop.f32.mrb[0].mxu0
    %409 = vdwg.mxu0
    %v410 = vpack.c.bf16 %v364, %v364
    %v411 = vpack.c.bf16 %v366, %v366
    %v412 = vpack.c.bf16 %v405, %v405
    %413 = vmatprep.subr.bf16.mxu0 0
    %414 = vmatpush1.bf16.xpose.msra.mxu0 %v411
    %415 = vmatprep.subr.bf16.mxu0 0
    %416 = vmatpush1.bf16.xpose.msra.mxu0 0
    %417 = vmatprep.subr.bf16.mxu0 0
    %418 = vmatpush1.bf16.xpose.msra.mxu0 0
    %419 = vmatprep.subr.bf16.mxu0 0
    %420 = vmatpush1.bf16.xpose.msra.mxu0 0
    %421 = vmatprep.subr.bf16.mxu0 0
    %422 = vmatpush1.bf16.xpose.msra.mxu0 0
    %423 = vmatprep.subr.bf16.mxu0 0
    %424 = vmatpush1.bf16.xpose.msra.mxu0 0
    %425 = vmatprep.subr.bf16.mxu0 0
    %426 = vmatpush1.bf16.xpose.msra.mxu0 0
    %427 = vmatprep.subr.bf16.mxu0 0
    %428 = vmatpush1.bf16.xpose.msra.mxu0 0
    %429 = vmatprep.subr.bf16.mxu0 0
    %430 = vmatpush1.bf16.xpose.msra.mxu0 0
    %431 = vmatprep.subr.bf16.mxu0 0
    %432 = vmatpush1.bf16.xpose.msra.mxu0 0
    %433 = vmatprep.subr.bf16.mxu0 0
    %434 = vmatpush1.bf16.xpose.msra.mxu0 0
    %435 = vmatprep.subr.bf16.mxu0 0
    %436 = vmatpush1.bf16.xpose.msra.mxu0 0
    %437 = vmatprep.subr.bf16.mxu0 0
    %438 = vmatpush1.bf16.xpose.msra.mxu0 0
    %439 = vmatprep.subr.bf16.mxu0 0
    %440 = vmatpush1.bf16.xpose.msra.mxu0 0
    %441 = vmatprep.subr.bf16.mxu0 0
    %442 = vmatpush1.bf16.xpose.msra.mxu0 0
    %443 = vmatprep.subr.bf16.mxu0 0
    %444 = vmatpush1.bf16.xpose.msra.mxu0 0
    %445 = vmatprep.mubr.bf16.mxu0 0
    %446 = vmatmul.mubr.bf16.gmra.mrb[0].mxu0 %v410
    %v447 = vpop.f32.mrb[0].mxu0
    %v448 = vadd.f32 0.0, %v447
    %v449 = vpop.f32.mrb[0].mxu0
    %v450 = vpop.f32.mrb[0].mxu0
    %v451 = vpop.f32.mrb[0].mxu0
    %452 = vdwg.mxu0
    %vm453 = vcmask 64512
    %v454 = vsel %vm453, %v448, -inf
    %455 = vmax.xlane.f32.xlu0 %v454
    %v456 = vpop.xlane.xlu0 %455
    %v457 = vsub.f32 %v448, %v456
    %v458 = vmul.f32 %v457, 1.442695
    %v459 = vpow.pop %v458
    %v460 = vsel %vm453, %v459, 0.0
    %461 = vadd.xlane.f32.xlu0 %v460
    %v462 = vpop.xlane.xlu0 %461
    %v463 = vrcp.pop %v462
    %v464 = vmul.f32 %v459, %v463
    %v465 = vpack.c.bf16 %v464, %v464
    %v467 = vsel %vm453, %v465, 0
    %vm469 = vcmask 1043456
    %v471 = vsel %vm469, %v412, 0
    %473 = vmatprep.subr.bf16.mxu0 0
    %474 = vmatpush1.bf16.msra.mxu0 %v471
    %475 = vmatprep.subr.bf16.mxu0 0
    %476 = vmatpush1.bf16.msra.mxu0 0
    %477 = vmatprep.subr.bf16.mxu0 0
    %478 = vmatpush1.bf16.msra.mxu0 0
    %479 = vmatprep.subr.bf16.mxu0 0
    %480 = vmatpush1.bf16.msra.mxu0 0
    %481 = vmatprep.subr.bf16.mxu0 0
    %482 = vmatpush1.bf16.msra.mxu0 0
    %483 = vmatprep.subr.bf16.mxu0 0
    %484 = vmatpush1.bf16.msra.mxu0 0
    %485 = vmatprep.subr.bf16.mxu0 0
    %486 = vmatpush1.bf16.msra.mxu0 0
    %487 = vmatprep.subr.bf16.mxu0 0
    %488 = vmatpush1.bf16.msra.mxu0 0
    %489 = vmatprep.subr.bf16.mxu0 0
    %490 = vmatpush1.bf16.msra.mxu0 0
    %491 = vmatprep.subr.bf16.mxu0 0
    %492 = vmatpush1.bf16.msra.mxu0 0
    %493 = vmatprep.subr.bf16.mxu0 0
    %494 = vmatpush1.bf16.msra.mxu0 0
    %495 = vmatprep.subr.bf16.mxu0 0
    %496 = vmatpush1.bf16.msra.mxu0 0
    %497 = vmatprep.subr.bf16.mxu0 0
    %498 = vmatpush1.bf16.msra.mxu0 0
    %499 = vmatprep.subr.bf16.mxu0 0
    %500 = vmatpush1.bf16.msra.mxu0 0
    %501 = vmatprep.subr.bf16.mxu0 0
    %502 = vmatpush1.bf16.msra.mxu0 0
    %503 = vmatprep.subr.bf16.mxu0 0
    %504 = vmatpush1.bf16.msra.mxu0 0
    %505 = vmatprep.mubr.bf16.mxu0 0
    %506 = vmatmul.mubr.bf16.gmra.mrb[0].mxu0 %v467
    %v507 = vpop.f32.mrb[0].mxu0
    %v508 = vadd.f32 0.0, %v507
    %v509 = vpop.f32.mrb[0].mxu0
    %v510 = vpop.f32.mrb[0].mxu0
    %v511 = vpop.f32.mrb[0].mxu0
    %512 = vdwg.mxu0
    %v513 = vld [vmem:[#allocation5] sm:$0xf]
    %v514 = vld [vmem:[#allocation8] sm:$0xff]
    %v515 = vld [vmem:[#allocation8 + $0x8] sm:$0xf]
    %v516 = vld [vmem:[#allocation8 + $0xc] sm:$0xff]
    %v517 = vld [vmem:[#allocation8 + $0x14] sm:$0xf]
    %v518 = vld [vmem:[#allocation8 + $0x18] sm:$0xff]
    %v519 = vld [vmem:[#allocation8 + $0x20] sm:$0xf]
    %v520 = vld [vmem:[#allocation8 + $0x24] sm:$0xff]
    %v521 = vld [vmem:[#allocation8 + $0x2c] sm:$0xf]
    %v522 = vld [vmem:[#allocation8 + $0x30] sm:$0xff]
    %v523 = vld [vmem:[#allocation8 + $0x38] sm:$0xf]
    %v524 = vld [vmem:[#allocation8 + $0x3c] sm:$0xff]
    %v525 = vld [vmem:[#allocation8 + $0x44] sm:$0xf]
    %v526 = vld [vmem:[#allocation8 + $0x48] sm:$0xff]
    %v527 = vld [vmem:[#allocation8 + $0x50] sm:$0xf]
    %v528 = vld [vmem:[#allocation8 + $0x54] sm:$0xff]
    %v529 = vld [vmem:[#allocation8 + $0x5c] sm:$0xf]
    %v530 = vld [vmem:[#allocation8 + $0x60] sm:$0xff]
    %v531 = vld [vmem:[#allocation8 + $0x68] sm:$0xf]
    %v532 = vld [vmem:[#allocation8 + $0x6c] sm:$0xff]
    %v533 = vld [vmem:[#allocation8 + $0x74] sm:$0xf]
    %v534 = vld [vmem:[#allocation8 + $0x78] sm:$0xff]
    %v535 = vld [vmem:[#allocation8 + $0x80] sm:$0xf]
    %v536 = vld [vmem:[#allocation8 + $0x84] sm:$0xff]
    %v537 = vld [vmem:[#allocation8 + $0x8c] sm:$0xf]
    %v538 = vld [vmem:[#allocation8 + $0x90] sm:$0xff]
    %v539 = vld [vmem:[#allocation8 + $0x98] sm:$0xf]
    %v540 = vld [vmem:[#allocation8 + $0x9c] sm:$0xff]
    %v541 = vld [vmem:[#allocation8 + $0xa4] sm:$0xf]
    %v542 = vld [vmem:[#allocation8 + $0xa8] sm:$0xff]
    %v543 = vld [vmem:[#allocation8 + $0xb0] sm:$0xf]
    %v544 = vld [vmem:[#allocation8 + $0xb4] sm:$0xff]
    %v545 = vld [vmem:[#allocation8 + $0xbc] sm:$0xf]
    %v546 = vld [vmem:[%s6] sm:$0x7]
    %v548 = vlaneseq
    %v549 = vshrl.u32 %v548, 7
    %v550 = vsub.s32 0, %v549
    %v551 = vrot.slane %v546, %v550
    %v552 = vlaneseq
    %v553 = vshrl.u32 %v552, 7
    %v554 = vsub.s32 1, %v553
    %v555 = vrot.slane %v546, %v554
    %v556 = vlaneseq
    %v557 = vshrl.u32 %v556, 7
    %v558 = vsub.s32 2, %v557
    %v559 = vrot.slane %v546, %v558
    %v595 = vunpack.c.l.b16 %v514
    %v596 = vunpack.c.h.b16 %v514
    %v597 = vunpack.c.l.b16 %v515
    %v598 = vunpack.c.l.b16 %v516
    %v599 = vunpack.c.h.b16 %v516
    %v600 = vunpack.c.l.b16 %v517
    %v601 = vunpack.c.l.b16 %v518
    %v602 = vunpack.c.h.b16 %v518
    %v603 = vunpack.c.l.b16 %v519
    %v604 = vunpack.c.l.b16 %v520
    %v605 = vunpack.c.h.b16 %v520
    %v606 = vunpack.c.l.b16 %v521
    %v607 = vunpack.c.l.b16 %v522
    %v608 = vunpack.c.h.b16 %v522
    %v609 = vunpack.c.l.b16 %v523
    %v610 = vunpack.c.l.b16 %v524
    %v611 = vunpack.c.h.b16 %v524
    %v612 = vunpack.c.l.b16 %v525
    %v613 = vunpack.c.l.b16 %v526
    %v614 = vunpack.c.h.b16 %v526
    %v615 = vunpack.c.l.b16 %v527
    %v616 = vunpack.c.l.b16 %v528
    %v617 = vunpack.c.h.b16 %v528
    %v618 = vunpack.c.l.b16 %v529
    %v619 = vunpack.c.l.b16 %v530
    %v620 = vunpack.c.h.b16 %v530
    %v621 = vunpack.c.l.b16 %v531
    %v622 = vunpack.c.l.b16 %v532
    %v623 = vunpack.c.h.b16 %v532
    %v624 = vunpack.c.l.b16 %v533
    %v625 = vunpack.c.l.b16 %v534
    %v626 = vunpack.c.h.b16 %v534
    %v627 = vunpack.c.l.b16 %v535
    %v628 = vunpack.c.l.b16 %v536
    %v629 = vunpack.c.h.b16 %v536
    %v630 = vunpack.c.l.b16 %v537
    %v631 = vunpack.c.l.b16 %v538
    %v632 = vunpack.c.h.b16 %v538
    %v633 = vunpack.c.l.b16 %v539
    %v634 = vunpack.c.l.b16 %v540
    %v635 = vunpack.c.h.b16 %v540
    %v636 = vunpack.c.l.b16 %v541
    %v637 = vunpack.c.l.b16 %v542
    %v638 = vunpack.c.h.b16 %v542
    %v639 = vunpack.c.l.b16 %v543
    %v640 = vunpack.c.l.b16 %v544
    %v641 = vunpack.c.h.b16 %v544
    %v642 = vunpack.c.l.b16 %v545
    %v643 = vpack.c.b16 %v598, %v595
    %v644 = vpack.c.b16 %v599, %v596
    %v645 = vpack.c.b16 %v600, %v597
    %v646 = vpack.c.b16 %v604, %v601
    %v647 = vpack.c.b16 %v605, %v602
    %v648 = vpack.c.b16 %v606, %v603
    %v649 = vpack.c.b16 %v610, %v607
    %v650 = vpack.c.b16 %v611, %v608
    %v651 = vpack.c.b16 %v612, %v609
    %v652 = vpack.c.b16 %v616, %v613
    %v653 = vpack.c.b16 %v617, %v614
    %v654 = vpack.c.b16 %v618, %v615
    %v655 = vpack.c.b16 %v622, %v619
    %v656 = vpack.c.b16 %v623, %v620
    %v657 = vpack.c.b16 %v624, %v621
    %v658 = vpack.c.b16 %v628, %v625
    %v659 = vpack.c.b16 %v629, %v626
    %v660 = vpack.c.b16 %v630, %v627
    %v661 = vpack.c.b16 %v634, %v631
    %v662 = vpack.c.b16 %v635, %v632
    %v663 = vpack.c.b16 %v636, %v633
    %v664 = vpack.c.b16 %v640, %v637
    %v665 = vpack.c.b16 %v641, %v638
    %v666 = vpack.c.b16 %v642, %v639
    %691 = vmatprep.subr.bf16.mxu0 %v644
    %692 = vmatpush1.bf16.msra.mxu0 %v643
    %693 = vmatprep.subr.bf16.mxu0 %v647
    %694 = vmatpush1.bf16.msra.mxu0 %v646
    %695 = vmatprep.subr.bf16.mxu0 %v650
    %696 = vmatpush1.bf16.msra.mxu0 %v649
    %697 = vmatprep.subr.bf16.mxu0 %v653
    %698 = vmatpush1.bf16.msra.mxu0 %v652
    %699 = vmatprep.subr.bf16.mxu0 %v656
    %700 = vmatpush1.bf16.msra.mxu0 %v655
    %701 = vmatprep.subr.bf16.mxu0 %v659
    %702 = vmatpush1.bf16.msra.mxu0 %v658
    %703 = vmatprep.subr.bf16.mxu0 %v662
    %704 = vmatpush1.bf16.msra.mxu0 %v661
    %705 = vmatprep.subr.bf16.mxu0 %v665
    %706 = vmatpush1.bf16.msra.mxu0 %v664
    %707 = vmatprep.subr.bf16.mxu0 0
    %708 = vmatpush1.bf16.msra.mxu0 0
    %709 = vmatprep.subr.bf16.mxu0 0
    %710 = vmatpush1.bf16.msra.mxu0 0
    %711 = vmatprep.subr.bf16.mxu0 0
    %712 = vmatpush1.bf16.msra.mxu0 0
    %713 = vmatprep.subr.bf16.mxu0 0
    %714 = vmatpush1.bf16.msra.mxu0 0
    %715 = vmatprep.subr.bf16.mxu0 0
    %716 = vmatpush1.bf16.msra.mxu0 0
    %717 = vmatprep.subr.bf16.mxu0 0
    %718 = vmatpush1.bf16.msra.mxu0 0
    %719 = vmatprep.subr.bf16.mxu0 0
    %720 = vmatpush1.bf16.msra.mxu0 0
    %721 = vmatprep.subr.bf16.mxu0 0
    %722 = vmatpush1.bf16.msra.mxu0 0
    %723 = vmatprep.mubr.bf16.mxu0 0
    %724 = vmatmul.mubr.bf16.gmra.mrb[0].mxu0 %v513
    %v725 = vpop.f32.mrb[0].mxu0
    %v726 = vadd.f32 %v551, %v725
    %v727 = vpop.f32.mrb[0].mxu0
    %v728 = vadd.f32 %v555, %v727
    %v729 = vpop.f32.mrb[0].mxu0
    %v730 = vpop.f32.mrb[0].mxu0
    %731 = vdwg.mxu0
    %732 = vmatprep.subr.bf16.mxu0 0
    %733 = vmatpush1.bf16.msra.mxu0 %v645
    %734 = vmatprep.subr.bf16.mxu0 0
    %735 = vmatpush1.bf16.msra.mxu0 %v648
    %736 = vmatprep.subr.bf16.mxu0 0
    %737 = vmatpush1.bf16.msra.mxu0 %v651
    %738 = vmatprep.subr.bf16.mxu0 0
    %739 = vmatpush1.bf16.msra.mxu0 %v654
    %740 = vmatprep.subr.bf16.mxu0 0
    %741 = vmatpush1.bf16.msra.mxu0 %v657
    %742 = vmatprep.subr.bf16.mxu0 0
    %743 = vmatpush1.bf16.msra.mxu0 %v660
    %744 = vmatprep.subr.bf16.mxu0 0
    %745 = vmatpush1.bf16.msra.mxu0 %v663
    %746 = vmatprep.subr.bf16.mxu0 0
    %747 = vmatpush1.bf16.msra.mxu0 %v666
    %748 = vmatprep.subr.bf16.mxu0 0
    %749 = vmatpush1.bf16.msra.mxu0 0
    %750 = vmatprep.subr.bf16.mxu0 0
    %751 = vmatpush1.bf16.msra.mxu0 0
    %752 = vmatprep.subr.bf16.mxu0 0
    %753 = vmatpush1.bf16.msra.mxu0 0
    %754 = vmatprep.subr.bf16.mxu0 0
    %755 = vmatpush1.bf16.msra.mxu0 0
    %756 = vmatprep.subr.bf16.mxu0 0
    %757 = vmatpush1.bf16.msra.mxu0 0
    %758 = vmatprep.subr.bf16.mxu0 0
    %759 = vmatpush1.bf16.msra.mxu0 0
    %760 = vmatprep.subr.bf16.mxu0 0
    %761 = vmatpush1.bf16.msra.mxu0 0
    %762 = vmatprep.subr.bf16.mxu0 0
    %763 = vmatpush1.bf16.msra.mxu0 0
    %764 = vmatprep.mubr.bf16.mxu0 0
    %765 = vmatmul.mubr.bf16.gmra.mrb[0].mxu0 %v513
    %v766 = vpop.f32.mrb[0].mxu0
    %v767 = vadd.f32 %v559, %v766
    %v768 = vpop.f32.mrb[0].mxu0
    %v769 = vpop.f32.mrb[0].mxu0
    %v770 = vpop.f32.mrb[0].mxu0
    %771 = vdwg.mxu0
    %v772 = vpack.c.bf16 %v726, %v726
    %v773 = vpack.c.bf16 %v728, %v728
    %v774 = vpack.c.bf16 %v767, %v767
    %775 = vmatprep.subr.bf16.mxu0 0
    %776 = vmatpush1.bf16.xpose.msra.mxu0 %v773
    %777 = vmatprep.subr.bf16.mxu0 0
    %778 = vmatpush1.bf16.xpose.msra.mxu0 0
    %779 = vmatprep.subr.bf16.mxu0 0
    %780 = vmatpush1.bf16.xpose.msra.mxu0 0
    %781 = vmatprep.subr.bf16.mxu0 0
    %782 = vmatpush1.bf16.xpose.msra.mxu0 0
    %783 = vmatprep.subr.bf16.mxu0 0
    %784 = vmatpush1.bf16.xpose.msra.mxu0 0
    %785 = vmatprep.subr.bf16.mxu0 0
    %786 = vmatpush1.bf16.xpose.msra.mxu0 0
    %787 = vmatprep.subr.bf16.mxu0 0
    %788 = vmatpush1.bf16.xpose.msra.mxu0 0
    %789 = vmatprep.subr.bf16.mxu0 0
    %790 = vmatpush1.bf16.xpose.msra.mxu0 0
    %791 = vmatprep.subr.bf16.mxu0 0
    %792 = vmatpush1.bf16.xpose.msra.mxu0 0
    %793 = vmatprep.subr.bf16.mxu0 0
    %794 = vmatpush1.bf16.xpose.msra.mxu0 0
    %795 = vmatprep.subr.bf16.mxu0 0
    %796 = vmatpush1.bf16.xpose.msra.mxu0 0
    %797 = vmatprep.subr.bf16.mxu0 0
    %798 = vmatpush1.bf16.xpose.msra.mxu0 0
    %799 = vmatprep.subr.bf16.mxu0 0
    %800 = vmatpush1.bf16.xpose.msra.mxu0 0
    %801 = vmatprep.subr.bf16.mxu0 0
    %802 = vmatpush1.bf16.xpose.msra.mxu0 0
    %803 = vmatprep.subr.bf16.mxu0 0
    %804 = vmatpush1.bf16.xpose.msra.mxu0 0
    %805 = vmatprep.subr.bf16.mxu0 0
    %806 = vmatpush1.bf16.xpose.msra.mxu0 0
    %807 = vmatprep.mubr.bf16.mxu0 0
    %808 = vmatmul.mubr.bf16.gmra.mrb[0].mxu0 %v772
    %v809 = vpop.f32.mrb[0].mxu0
    %v810 = vadd.f32 0.0, %v809
    %v811 = vpop.f32.mrb[0].mxu0
    %v812 = vpop.f32.mrb[0].mxu0
    %v813 = vpop.f32.mrb[0].mxu0
    %814 = vdwg.mxu0
    %v815 = vsel %vm453, %v810, -inf
    %816 = vmax.xlane.f32.xlu0 %v815
    %v817 = vpop.xlane.xlu0 %816
    %v818 = vsub.f32 %v810, %v817
    %v819 = vmul.f32 %v818, 1.442695
    %v820 = vpow.pop %v819
    %v821 = vsel %vm453, %v820, 0.0
    %822 = vadd.xlane.f32.xlu0 %v821
    %v823 = vpop.xlane.xlu0 %822
    %v824 = vrcp.pop %v823
    %v825 = vmul.f32 %v820, %v824
    %v826 = vpack.c.bf16 %v825, %v825
    %v828 = vsel %vm453, %v826, 0
    %v831 = vsel %vm469, %v774, 0
    %833 = vmatprep.subr.bf16.mxu0 0
    %834 = vmatpush1.bf16.msra.mxu0 %v831
    %835 = vmatprep.subr.bf16.mxu0 0
    %836 = vmatpush1.bf16.msra.mxu0 0
    %837 = vmatprep.subr.bf16.mxu0 0
    %838 = vmatpush1.bf16.msra.mxu0 0
    %839 = vmatprep.subr.bf16.mxu0 0
    %840 = vmatpush1.bf16.msra.mxu0 0
    %841 = vmatprep.subr.bf16.mxu0 0
    %842 = vmatpush1.bf16.msra.mxu0 0
    %843 = vmatprep.subr.bf16.mxu0 0
    %844 = vmatpush1.bf16.msra.mxu0 0
    %845 = vmatprep.subr.bf16.mxu0 0
    %846 = vmatpush1.bf16.msra.mxu0 0
    %847 = vmatprep.subr.bf16.mxu0 0
    %848 = vmatpush1.bf16.msra.mxu0 0
    %849 = vmatprep.subr.bf16.mxu0 0
    %850 = vmatpush1.bf16.msra.mxu0 0
    %851 = vmatprep.subr.bf16.mxu0 0
    %852 = vmatpush1.bf16.msra.mxu0 0
    %853 = vmatprep.subr.bf16.mxu0 0
    %854 = vmatpush1.bf16.msra.mxu0 0
    %855 = vmatprep.subr.bf16.mxu0 0
    %856 = vmatpush1.bf16.msra.mxu0 0
    %857 = vmatprep.subr.bf16.mxu0 0
    %858 = vmatpush1.bf16.msra.mxu0 0
    %859 = vmatprep.subr.bf16.mxu0 0
    %860 = vmatpush1.bf16.msra.mxu0 0
    %861 = vmatprep.subr.bf16.mxu0 0
    %862 = vmatpush1.bf16.msra.mxu0 0
    %863 = vmatprep.subr.bf16.mxu0 0
    %864 = vmatpush1.bf16.msra.mxu0 0
    %865 = vmatprep.mubr.bf16.mxu0 0
    %866 = vmatmul.mubr.bf16.gmra.mrb[0].mxu0 %v828
    %v867 = vpop.f32.mrb[0].mxu0
    %v868 = vadd.f32 0.0, %v867
    %v869 = vpop.f32.mrb[0].mxu0
    %v870 = vpop.f32.mrb[0].mxu0
    %v871 = vpop.f32.mrb[0].mxu0
    %872 = vdwg.mxu0
    %v873 = vld [vmem:[%s2] sm:$0xf]
    %v874 = vld [vmem:[#allocation10] sm:$0xff]
    %v875 = vld [vmem:[#allocation10 + $0x8] sm:$0xf]
    %v876 = vld [vmem:[#allocation10 + $0xc] sm:$0xff]
    %v877 = vld [vmem:[#allocation10 + $0x14] sm:$0xf]
    %v878 = vld [vmem:[#allocation10 + $0x18] sm:$0xff]
    %v879 = vld [vmem:[#allocation10 + $0x20] sm:$0xf]
    %v880 = vld [vmem:[#allocation10 + $0x24] sm:$0xff]
    %v881 = vld [vmem:[#allocation10 + $0x2c] sm:$0xf]
    %v882 = vld [vmem:[#allocation10 + $0x30] sm:$0xff]
    %v883 = vld [vmem:[#allocation10 + $0x38] sm:$0xf]
    %v884 = vld [vmem:[#allocation10 + $0x3c] sm:$0xff]
    %v885 = vld [vmem:[#allocation10 + $0x44] sm:$0xf]
    %v886 = vld [vmem:[#allocation10 + $0x48] sm:$0xff]
    %v887 = vld [vmem:[#allocation10 + $0x50] sm:$0xf]
    %v888 = vld [vmem:[#allocation10 + $0x54] sm:$0xff]
    %v889 = vld [vmem:[#allocation10 + $0x5c] sm:$0xf]
    %v890 = vld [vmem:[#allocation10 + $0x60] sm:$0xff]
    %v891 = vld [vmem:[#allocation10 + $0x68] sm:$0xf]
    %v892 = vld [vmem:[#allocation10 + $0x6c] sm:$0xff]
    %v893 = vld [vmem:[#allocation10 + $0x74] sm:$0xf]
    %v894 = vld [vmem:[#allocation10 + $0x78] sm:$0xff]
    %v895 = vld [vmem:[#allocation10 + $0x80] sm:$0xf]
    %v896 = vld [vmem:[#allocation10 + $0x84] sm:$0xff]
    %v897 = vld [vmem:[#allocation10 + $0x8c] sm:$0xf]
    %v898 = vld [vmem:[#allocation10 + $0x90] sm:$0xff]
    %v899 = vld [vmem:[#allocation10 + $0x98] sm:$0xf]
    %v900 = vld [vmem:[#allocation10 + $0x9c] sm:$0xff]
    %v901 = vld [vmem:[#allocation10 + $0xa4] sm:$0xf]
    %v902 = vld [vmem:[#allocation10 + $0xa8] sm:$0xff]
    %v903 = vld [vmem:[#allocation10 + $0xb0] sm:$0xf]
    %v904 = vld [vmem:[#allocation10 + $0xb4] sm:$0xff]
    %v905 = vld [vmem:[#allocation10 + $0xbc] sm:$0xf]
    %v906 = vld [vmem:[%s8] sm:$0x7]
    %v908 = vlaneseq
    %v909 = vshrl.u32 %v908, 7
    %v910 = vsub.s32 0, %v909
    %v911 = vrot.slane %v906, %v910
    %v912 = vlaneseq
    %v913 = vshrl.u32 %v912, 7
    %v914 = vsub.s32 1, %v913
    %v915 = vrot.slane %v906, %v914
    %v916 = vlaneseq
    %v917 = vshrl.u32 %v916, 7
    %v918 = vsub.s32 2, %v917
    %v919 = vrot.slane %v906, %v918
    %v955 = vunpack.c.l.b16 %v874
    %v956 = vunpack.c.h.b16 %v874
    %v957 = vunpack.c.l.b16 %v875
    %v958 = vunpack.c.l.b16 %v876
    %v959 = vunpack.c.h.b16 %v876
    %v960 = vunpack.c.l.b16 %v877
    %v961 = vunpack.c.l.b16 %v878
    %v962 = vunpack.c.h.b16 %v878
    %v963 = vunpack.c.l.b16 %v879
    %v964 = vunpack.c.l.b16 %v880
    %v965 = vunpack.c.h.b16 %v880
    %v966 = vunpack.c.l.b16 %v881
    %v967 = vunpack.c.l.b16 %v882
    %v968 = vunpack.c.h.b16 %v882
    %v969 = vunpack.c.l.b16 %v883
    %v970 = vunpack.c.l.b16 %v884
    %v971 = vunpack.c.h.b16 %v884
    %v972 = vunpack.c.l.b16 %v885
    %v973 = vunpack.c.l.b16 %v886
    %v974 = vunpack.c.h.b16 %v886
    %v975 = vunpack.c.l.b16 %v887
    %v976 = vunpack.c.l.b16 %v888
    %v977 = vunpack.c.h.b16 %v888
    %v978 = vunpack.c.l.b16 %v889
    %v979 = vunpack.c.l.b16 %v890
    %v980 = vunpack.c.h.b16 %v890
    %v981 = vunpack.c.l.b16 %v891
    %v982 = vunpack.c.l.b16 %v892
    %v983 = vunpack.c.h.b16 %v892
    %v984 = vunpack.c.l.b16 %v893
    %v985 = vunpack.c.l.b16 %v894
    %v986 = vunpack.c.h.b16 %v894
    %v987 = vunpack.c.l.b16 %v895
    %v988 = vunpack.c.l.b16 %v896
    %v989 = vunpack.c.h.b16 %v896
    %v990 = vunpack.c.l.b16 %v897
    %v991 = vunpack.c.l.b16 %v898
    %v992 = vunpack.c.h.b16 %v898
    %v993 = vunpack.c.l.b16 %v899
    %v994 = vunpack.c.l.b16 %v900
    %v995 = vunpack.c.h.b16 %v900
    %v996 = vunpack.c.l.b16 %v901
    %v997 = vunpack.c.l.b16 %v902
    %v998 = vunpack.c.h.b16 %v902
    %v999 = vunpack.c.l.b16 %v903
    %v1000 = vunpack.c.l.b16 %v904
    %v1001 = vunpack.c.h.b16 %v904
    %v1002 = vunpack.c.l.b16 %v905
    %v1003 = vpack.c.b16 %v958, %v955
    %v1004 = vpack.c.b16 %v959, %v956
    %v1005 = vpack.c.b16 %v960, %v957
    %v1006 = vpack.c.b16 %v964, %v961
    %v1007 = vpack.c.b16 %v965, %v962
    %v1008 = vpack.c.b16 %v966, %v963
    %v1009 = vpack.c.b16 %v970, %v967
    %v1010 = vpack.c.b16 %v971, %v968
    %v1011 = vpack.c.b16 %v972, %v969
    %v1012 = vpack.c.b16 %v976, %v973
    %v1013 = vpack.c.b16 %v977, %v974
    %v1014 = vpack.c.b16 %v978, %v975
    %v1015 = vpack.c.b16 %v982, %v979
    %v1016 = vpack.c.b16 %v983, %v980
    %v1017 = vpack.c.b16 %v984, %v981
    %v1018 = vpack.c.b16 %v988, %v985
    %v1019 = vpack.c.b16 %v989, %v986
    %v1020 = vpack.c.b16 %v990, %v987
    %v1021 = vpack.c.b16 %v994, %v991
    %v1022 = vpack.c.b16 %v995, %v992
    %v1023 = vpack.c.b16 %v996, %v993
    %v1024 = vpack.c.b16 %v1000, %v997
    %v1025 = vpack.c.b16 %v1001, %v998
    %v1026 = vpack.c.b16 %v1002, %v999
    %1051 = vmatprep.subr.bf16.mxu0 %v1004
    %1052 = vmatpush1.bf16.msra.mxu0 %v1003
    %1053 = vmatprep.subr.bf16.mxu0 %v1007
    %1054 = vmatpush1.bf16.msra.mxu0 %v1006
    %1055 = vmatprep.subr.bf16.mxu0 %v1010
    %1056 = vmatpush1.bf16.msra.mxu0 %v1009
    %1057 = vmatprep.subr.bf16.mxu0 %v1013
    %1058 = vmatpush1.bf16.msra.mxu0 %v1012
    %1059 = vmatprep.subr.bf16.mxu0 %v1016
    %1060 = vmatpush1.bf16.msra.mxu0 %v1015
    %1061 = vmatprep.subr.bf16.mxu0 %v1019
    %1062 = vmatpush1.bf16.msra.mxu0 %v1018
    %1063 = vmatprep.subr.bf16.mxu0 %v1022
    %1064 = vmatpush1.bf16.msra.mxu0 %v1021
    %1065 = vmatprep.subr.bf16.mxu0 %v1025
    %1066 = vmatpush1.bf16.msra.mxu0 %v1024
    %1067 = vmatprep.subr.bf16.mxu0 0
    %1068 = vmatpush1.bf16.msra.mxu0 0
    %1069 = vmatprep.subr.bf16.mxu0 0
    %1070 = vmatpush1.bf16.msra.mxu0 0
    %1071 = vmatprep.subr.bf16.mxu0 0
    %1072 = vmatpush1.bf16.msra.mxu0 0
    %1073 = vmatprep.subr.bf16.mxu0 0
    %1074 = vmatpush1.bf16.msra.mxu0 0
    %1075 = vmatprep.subr.bf16.mxu0 0
    %1076 = vmatpush1.bf16.msra.mxu0 0
    %1077 = vmatprep.subr.bf16.mxu0 0
    %1078 = vmatpush1.bf16.msra.mxu0 0
    %1079 = vmatprep.subr.bf16.mxu0 0
    %1080 = vmatpush1.bf16.msra.mxu0 0
    %1081 = vmatprep.subr.bf16.mxu0 0
    %1082 = vmatpush1.bf16.msra.mxu0 0
    %1083 = vmatprep.mubr.bf16.mxu0 0
    %1084 = vmatmul.mubr.bf16.gmra.mrb[0].mxu0 %v873
    %v1085 = vpop.f32.mrb[0].mxu0
    %v1086 = vadd.f32 %v911, %v1085
    %v1087 = vpop.f32.mrb[0].mxu0
    %v1088 = vadd.f32 %v915, %v1087
    %v1089 = vpop.f32.mrb[0].mxu0
    %v1090 = vpop.f32.mrb[0].mxu0
    %1091 = vdwg.mxu0
    %1092 = vmatprep.subr.bf16.mxu0 0
    %1093 = vmatpush1.bf16.msra.mxu0 %v1005
    %1094 = vmatprep.subr.bf16.mxu0 0
    %1095 = vmatpush1.bf16.msra.mxu0 %v1008
    %1096 = vmatprep.subr.bf16.mxu0 0
    %1097 = vmatpush1.bf16.msra.mxu0 %v1011
    %1098 = vmatprep.subr.bf16.mxu0 0
    %1099 = vmatpush1.bf16.msra.mxu0 %v1014
    %1100 = vmatprep.subr.bf16.mxu0 0
    %1101 = vmatpush1.bf16.msra.mxu0 %v1017
    %1102 = vmatprep.subr.bf16.mxu0 0
    %1103 = vmatpush1.bf16.msra.mxu0 %v1020
    %1104 = vmatprep.subr.bf16.mxu0 0
    %1105 = vmatpush1.bf16.msra.mxu0 %v1023
    %1106 = vmatprep.subr.bf16.mxu0 0
    %1107 = vmatpush1.bf16.msra.mxu0 %v1026
    %1108 = vmatprep.subr.bf16.mxu0 0
    %1109 = vmatpush1.bf16.msra.mxu0 0
    %1110 = vmatprep.subr.bf16.mxu0 0
    %1111 = vmatpush1.bf16.msra.mxu0 0
    %1112 = vmatprep.subr.bf16.mxu0 0
    %1113 = vmatpush1.bf16.msra.mxu0 0
    %1114 = vmatprep.subr.bf16.mxu0 0
    %1115 = vmatpush1.bf16.msra.mxu0 0
    %1116 = vmatprep.subr.bf16.mxu0 0
    %1117 = vmatpush1.bf16.msra.mxu0 0
    %1118 = vmatprep.subr.bf16.mxu0 0
    %1119 = vmatpush1.bf16.msra.mxu0 0
    %1120 = vmatprep.subr.bf16.mxu0 0
    %1121 = vmatpush1.bf16.msra.mxu0 0
    %1122 = vmatprep.subr.bf16.mxu0 0
    %1123 = vmatpush1.bf16.msra.mxu0 0
    %1124 = vmatprep.mubr.bf16.mxu0 0
    %1125 = vmatmul.mubr.bf16.gmra.mrb[0].mxu0 %v873
    %v1126 = vpop.f32.mrb[0].mxu0
    %v1127 = vadd.f32 %v919, %v1126
    %v1128 = vpop.f32.mrb[0].mxu0
    %v1129 = vpop.f32.mrb[0].mxu0
    %v1130 = vpop.f32.mrb[0].mxu0
    %1131 = vdwg.mxu0
    %v1132 = vpack.c.bf16 %v1086, %v1086
    %v1133 = vpack.c.bf16 %v1088, %v1088
    %v1134 = vpack.c.bf16 %v1127, %v1127
    %1135 = vmatprep.subr.bf16.mxu0 0
    %1136 = vmatpush1.bf16.xpose.msra.mxu0 %v1133
    %1137 = vmatprep.subr.bf16.mxu0 0
    %1138 = vmatpush1.bf16.xpose.msra.mxu0 0
    %1139 = vmatprep.subr.bf16.mxu0 0
    %1140 = vmatpush1.bf16.xpose.msra.mxu0 0
    %1141 = vmatprep.subr.bf16.mxu0 0
    %1142 = vmatpush1.bf16.xpose.msra.mxu0 0
    %1143 = vmatprep.subr.bf16.mxu0 0
    %1144 = vmatpush1.bf16.xpose.msra.mxu0 0
    %1145 = vmatprep.subr.bf16.mxu0 0
    %1146 = vmatpush1.bf16.xpose.msra.mxu0 0
    %1147 = vmatprep.subr.bf16.mxu0 0
    %1148 = vmatpush1.bf16.xpose.msra.mxu0 0
    %1149 = vmatprep.subr.bf16.mxu0 0
    %1150 = vmatpush1.bf16.xpose.msra.mxu0 0
    %1151 = vmatprep.subr.bf16.mxu0 0
    %1152 = vmatpush1.bf16.xpose.msra.mxu0 0
    %1153 = vmatprep.subr.bf16.mxu0 0
    %1154 = vmatpush1.bf16.xpose.msra.mxu0 0
    %1155 = vmatprep.subr.bf16.mxu0 0
    %1156 = vmatpush1.bf16.xpose.msra.mxu0 0
    %1157 = vmatprep.subr.bf16.mxu0 0
    %1158 = vmatpush1.bf16.xpose.msra.mxu0 0
    %1159 = vmatprep.subr.bf16.mxu0 0
    %1160 = vmatpush1.bf16.xpose.msra.mxu0 0
    %1161 = vmatprep.subr.bf16.mxu0 0
    %1162 = vmatpush1.bf16.xpose.msra.mxu0 0
    %1163 = vmatprep.subr.bf16.mxu0 0
    %1164 = vmatpush1.bf16.xpose.msra.mxu0 0
    %1165 = vmatprep.subr.bf16.mxu0 0
    %1166 = vmatpush1.bf16.xpose.msra.mxu0 0
    %1167 = vmatprep.mubr.bf16.mxu0 0
    %1168 = vmatmul.mubr.bf16.gmra.mrb[0].mxu0 %v1132
    %v1169 = vpop.f32.mrb[0].mxu0
    %v1170 = vadd.f32 0.0, %v1169
    %v1171 = vpop.f32.mrb[0].mxu0
    %v1172 = vpop.f32.mrb[0].mxu0
    %v1173 = vpop.f32.mrb[0].mxu0
    %1174 = vdwg.mxu0
    %v1175 = vsel %vm453, %v1170, -inf
    %1176 = vmax.xlane.f32.xlu0 %v1175
    %v1177 = vpop.xlane.xlu0 %1176
    %v1178 = vsub.f32 %v1170, %v1177
    %v1179 = vmul.f32 %v1178, 1.442695
    %v1180 = vpow.pop %v1179
    %v1181 = vsel %vm453, %v1180, 0.0
    %1182 = vadd.xlane.f32.xlu0 %v1181
    %v1183 = vpop.xlane.xlu0 %1182
    %v1184 = vrcp.pop %v1183
    %v1185 = vmul.f32 %v1180, %v1184
    %v1186 = vpack.c.bf16 %v1185, %v1185
    %v1188 = vsel %vm453, %v1186, 0
    %v1191 = vsel %vm469, %v1134, 0
    %1193 = vmatprep.subr.bf16.mxu0 0
    %1194 = vmatpush1.bf16.msra.mxu0 %v1191
    %1195 = vmatprep.subr.bf16.mxu0 0
    %1196 = vmatpush1.bf16.msra.mxu0 0
    %1197 = vmatprep.subr.bf16.mxu0 0
    %1198 = vmatpush1.bf16.msra.mxu0 0
    %1199 = vmatprep.subr.bf16.mxu0 0
    %1200 = vmatpush1.bf16.msra.mxu0 0
    %1201 = vmatprep.subr.bf16.mxu0 0
    %1202 = vmatpush1.bf16.msra.mxu0 0
    %1203 = vmatprep.subr.bf16.mxu0 0
    %1204 = vmatpush1.bf16.msra.mxu0 0
    %1205 = vmatprep.subr.bf16.mxu0 0
    %1206 = vmatpush1.bf16.msra.mxu0 0
    %1207 = vmatprep.subr.bf16.mxu0 0
    %1208 = vmatpush1.bf16.msra.mxu0 0
    %1209 = vmatprep.subr.bf16.mxu0 0
    %1210 = vmatpush1.bf16.msra.mxu0 0
    %1211 = vmatprep.subr.bf16.mxu0 0
    %1212 = vmatpush1.bf16.msra.mxu0 0
    %1213 = vmatprep.subr.bf16.mxu0 0
    %1214 = vmatpush1.bf16.msra.mxu0 0
    %1215 = vmatprep.subr.bf16.mxu0 0
    %1216 = vmatpush1.bf16.msra.mxu0 0
    %1217 = vmatprep.subr.bf16.mxu0 0
    %1218 = vmatpush1.bf16.msra.mxu0 0
    %1219 = vmatprep.subr.bf16.mxu0 0
    %1220 = vmatpush1.bf16.msra.mxu0 0
    %1221 = vmatprep.subr.bf16.mxu0 0
    %1222 = vmatpush1.bf16.msra.mxu0 0
    %1223 = vmatprep.subr.bf16.mxu0 0
    %1224 = vmatpush1.bf16.msra.mxu0 0
    %1225 = vmatprep.mubr.bf16.mxu0 0
    %1226 = vmatmul.mubr.bf16.gmra.mrb[0].mxu0 %v1188
    %v1227 = vpop.f32.mrb[0].mxu0
    %v1228 = vadd.f32 0.0, %v1227
    %v1229 = vpop.f32.mrb[0].mxu0
    %v1230 = vpop.f32.mrb[0].mxu0
    %v1231 = vpop.f32.mrb[0].mxu0
    %1232 = vdwg.mxu0
    %v1233 = vpack.c.bf16 %v508, %v508
    %v1234 = vld [vmem:[#allocation11] sm:$0xf]
    %v1235 = vld [vmem:[#allocation11 + $0x4] sm:$0xf]
    %v1236 = vld [vmem:[#allocation11 + $0x8] sm:$0xf]
    %v1237 = vld [vmem:[#allocation11 + $0xc] sm:$0xf]
    %v1238 = vld [vmem:[#allocation11 + $0x10] sm:$0xf]
    %v1239 = vld [vmem:[#allocation11 + $0x14] sm:$0xf]
    %v1240 = vld [vmem:[#allocation11 + $0x18] sm:$0xf]
    %v1241 = vld [vmem:[#allocation11 + $0x1c] sm:$0xf]
    %v1242 = vld [vmem:[#allocation11 + $0x20] sm:$0xf]
    %v1243 = vld [vmem:[#allocation11 + $0x24] sm:$0xf]
    %v1244 = vld [vmem:[#allocation11 + $0x28] sm:$0xf]
    %v1245 = vld [vmem:[#allocation11 + $0x2c] sm:$0xf]
    %v1246 = vld [vmem:[#allocation11 + $0x30] sm:$0xf]
    %v1247 = vld [vmem:[#allocation11 + $0x34] sm:$0xf]
    %v1248 = vld [vmem:[#allocation11 + $0x38] sm:$0xf]
    %v1249 = vld [vmem:[#allocation11 + $0x3c] sm:$0xf]
    %v1250 = vpack.c.bf16 %v868, %v868
    %v1251 = vld [vmem:[#allocation13] sm:$0xf]
    %v1252 = vld [vmem:[#allocation13 + $0x4] sm:$0xf]
    %v1253 = vld [vmem:[#allocation13 + $0x8] sm:$0xf]
    %v1254 = vld [vmem:[#allocation13 + $0xc] sm:$0xf]
    %v1255 = vld [vmem:[#allocation13 + $0x10] sm:$0xf]
    %v1256 = vld [vmem:[#allocation13 + $0x14] sm:$0xf]
    %v1257 = vld [vmem:[#allocation13 + $0x18] sm:$0xf]
    %v1258 = vld [vmem:[#allocation13 + $0x1c] sm:$0xf]
    %v1259 = vld [vmem:[#allocation13 + $0x20] sm:$0xf]
    %v1260 = vld [vmem:[#allocation13 + $0x24] sm:$0xf]
    %v1261 = vld [vmem:[#allocation13 + $0x28] sm:$0xf]
    %v1262 = vld [vmem:[#allocation13 + $0x2c] sm:$0xf]
    %v1263 = vld [vmem:[#allocation13 + $0x30] sm:$0xf]
    %v1264 = vld [vmem:[#allocation13 + $0x34] sm:$0xf]
    %v1265 = vld [vmem:[#allocation13 + $0x38] sm:$0xf]
    %v1266 = vld [vmem:[#allocation13 + $0x3c] sm:$0xf]
    %v1283 = vunpack.c.l.b16 %v1251
    %v1284 = vunpack.c.l.b16 %v1252
    %v1285 = vunpack.c.l.b16 %v1253
    %v1286 = vunpack.c.l.b16 %v1254
    %v1287 = vunpack.c.l.b16 %v1255
    %v1288 = vunpack.c.l.b16 %v1256
    %v1289 = vunpack.c.l.b16 %v1257
    %v1290 = vunpack.c.l.b16 %v1258
    %v1291 = vunpack.c.l.b16 %v1259
    %v1292 = vunpack.c.l.b16 %v1260
    %v1293 = vunpack.c.l.b16 %v1261
    %v1294 = vunpack.c.l.b16 %v1262
    %v1295 = vunpack.c.l.b16 %v1263
    %v1296 = vunpack.c.l.b16 %v1264
    %v1297 = vunpack.c.l.b16 %v1265
    %v1298 = vunpack.c.l.b16 %v1266
    %v1299 = vpack.c.b16 %v1284, %v1283
    %v1300 = vpack.c.b16 %v1286, %v1285
    %v1301 = vpack.c.b16 %v1288, %v1287
    %v1302 = vpack.c.b16 %v1290, %v1289
    %v1303 = vpack.c.b16 %v1292, %v1291
    %v1304 = vpack.c.b16 %v1294, %v1293
    %v1305 = vpack.c.b16 %v1296, %v1295
    %v1306 = vpack.c.b16 %v1298, %v1297
    %1315 = vmatprep.subr.bf16.mxu0 0
    %1316 = vmatpush1.bf16.msra.mxu0 %v1299
    %1317 = vmatprep.subr.bf16.mxu0 0
    %1318 = vmatpush1.bf16.msra.mxu0 %v1300
    %1319 = vmatprep.subr.bf16.mxu0 0
    %1320 = vmatpush1.bf16.msra.mxu0 %v1301
    %1321 = vmatprep.subr.bf16.mxu0 0
    %1322 = vmatpush1.bf16.msra.mxu0 %v1302
    %1323 = vmatprep.subr.bf16.mxu0 0
    %1324 = vmatpush1.bf16.msra.mxu0 %v1303
    %1325 = vmatprep.subr.bf16.mxu0 0
    %1326 = vmatpush1.bf16.msra.mxu0 %v1304
    %1327 = vmatprep.subr.bf16.mxu0 0
    %1328 = vmatpush1.bf16.msra.mxu0 %v1305
    %1329 = vmatprep.subr.bf16.mxu0 0
    %1330 = vmatpush1.bf16.msra.mxu0 %v1306
    %1331 = vmatprep.subr.bf16.mxu0 0
    %1332 = vmatpush1.bf16.msra.mxu0 0
    %1333 = vmatprep.subr.bf16.mxu0 0
    %1334 = vmatpush1.bf16.msra.mxu0 0
    %1335 = vmatprep.subr.bf16.mxu0 0
    %1336 = vmatpush1.bf16.msra.mxu0 0
    %1337 = vmatprep.subr.bf16.mxu0 0
    %1338 = vmatpush1.bf16.msra.mxu0 0
    %1339 = vmatprep.subr.bf16.mxu0 0
    %1340 = vmatpush1.bf16.msra.mxu0 0
    %1341 = vmatprep.subr.bf16.mxu0 0
    %1342 = vmatpush1.bf16.msra.mxu0 0
    %1343 = vmatprep.subr.bf16.mxu0 0
    %1344 = vmatpush1.bf16.msra.mxu0 0
    %1345 = vmatprep.subr.bf16.mxu0 0
    %1346 = vmatpush1.bf16.msra.mxu0 0
    %1347 = vmatprep.mubr.bf16.mxu0 0
    %1348 = vmatmul.mubr.bf16.gmra.mrb[0].mxu0 %v1250
    %v1349 = vpop.f32.mrb[0].mxu0
    %v1350 = vadd.f32 0.0, %v1349
    %v1351 = vpop.f32.mrb[0].mxu0
    %v1352 = vpop.f32.mrb[0].mxu0
    %v1353 = vpop.f32.mrb[0].mxu0
    %1354 = vdwg.mxu0
    %v1371 = vunpack.c.l.b16 %v1234
    %v1372 = vunpack.c.l.b16 %v1235
    %v1373 = vunpack.c.l.b16 %v1236
    %v1374 = vunpack.c.l.b16 %v1237
    %v1375 = vunpack.c.l.b16 %v1238
    %v1376 = vunpack.c.l.b16 %v1239
    %v1377 = vunpack.c.l.b16 %v1240
    %v1378 = vunpack.c.l.b16 %v1241
    %v1379 = vunpack.c.l.b16 %v1242
    %v1380 = vunpack.c.l.b16 %v1243
    %v1381 = vunpack.c.l.b16 %v1244
    %v1382 = vunpack.c.l.b16 %v1245
    %v1383 = vunpack.c.l.b16 %v1246
    %v1384 = vunpack.c.l.b16 %v1247
    %v1385 = vunpack.c.l.b16 %v1248
    %v1386 = vunpack.c.l.b16 %v1249
    %v1387 = vpack.c.b16 %v1372, %v1371
    %v1388 = vpack.c.b16 %v1374, %v1373
    %v1389 = vpack.c.b16 %v1376, %v1375
    %v1390 = vpack.c.b16 %v1378, %v1377
    %v1391 = vpack.c.b16 %v1380, %v1379
    %v1392 = vpack.c.b16 %v1382, %v1381
    %v1393 = vpack.c.b16 %v1384, %v1383
    %v1394 = vpack.c.b16 %v1386, %v1385
    %1403 = vmatprep.subr.bf16.mxu0 0
    %1404 = vmatpush1.bf16.msra.mxu0 %v1387
    %1405 = vmatprep.subr.bf16.mxu0 0
    %1406 = vmatpush1.bf16.msra.mxu0 %v1388
    %1407 = vmatprep.subr.bf16.mxu0 0
    %1408 = vmatpush1.bf16.msra.mxu0 %v1389
    %1409 = vmatprep.subr.bf16.mxu0 0
    %1410 = vmatpush1.bf16.msra.mxu0 %v1390
    %1411 = vmatprep.subr.bf16.mxu0 0
    %1412 = vmatpush1.bf16.msra.mxu0 %v1391
    %1413 = vmatprep.subr.bf16.mxu0 0
    %1414 = vmatpush1.bf16.msra.mxu0 %v1392
    %1415 = vmatprep.subr.bf16.mxu0 0
    %1416 = vmatpush1.bf16.msra.mxu0 %v1393
    %1417 = vmatprep.subr.bf16.mxu0 0
    %1418 = vmatpush1.bf16.msra.mxu0 %v1394
    %1419 = vmatprep.subr.bf16.mxu0 0
    %1420 = vmatpush1.bf16.msra.mxu0 0
    %1421 = vmatprep.subr.bf16.mxu0 0
    %1422 = vmatpush1.bf16.msra.mxu0 0
    %1423 = vmatprep.subr.bf16.mxu0 0
    %1424 = vmatpush1.bf16.msra.mxu0 0
    %1425 = vmatprep.subr.bf16.mxu0 0
    %1426 = vmatpush1.bf16.msra.mxu0 0
    %1427 = vmatprep.subr.bf16.mxu0 0
    %1428 = vmatpush1.bf16.msra.mxu0 0
    %1429 = vmatprep.subr.bf16.mxu0 0
    %1430 = vmatpush1.bf16.msra.mxu0 0
    %1431 = vmatprep.subr.bf16.mxu0 0
    %1432 = vmatpush1.bf16.msra.mxu0 0
    %1433 = vmatprep.subr.bf16.mxu0 0
    %1434 = vmatpush1.bf16.msra.mxu0 0
    %1435 = vmatprep.mubr.bf16.mxu0 0
    %1436 = vmatmul.mubr.bf16.gmra.mrb[0].mxu0 %v1233
    %v1437 = vpop.f32.mrb[0].mxu0
    %v1438 = vadd.f32 %v1350, %v1437
    %v1439 = vpop.f32.mrb[0].mxu0
    %v1440 = vpop.f32.mrb[0].mxu0
    %v1441 = vpop.f32.mrb[0].mxu0
    %1442 = vdwg.mxu0
    %v1443 = vpack.c.bf16 %v1228, %v1228
    %v1444 = vld [vmem:[#allocation14] sm:$0xf]
    %v1445 = vld [vmem:[#allocation14 + $0x4] sm:$0xf]
    %v1446 = vld [vmem:[#allocation14 + $0x8] sm:$0xf]
    %v1447 = vld [vmem:[#allocation14 + $0xc] sm:$0xf]
    %v1448 = vld [vmem:[#allocation14 + $0x10] sm:$0xf]
    %v1449 = vld [vmem:[#allocation14 + $0x14] sm:$0xf]
    %v1450 = vld [vmem:[#allocation14 + $0x18] sm:$0xf]
    %v1451 = vld [vmem:[#allocation14 + $0x1c] sm:$0xf]
    %v1452 = vld [vmem:[#allocation14 + $0x20] sm:$0xf]
    %v1453 = vld [vmem:[#allocation14 + $0x24] sm:$0xf]
    %v1454 = vld [vmem:[#allocation14 + $0x28] sm:$0xf]
    %v1455 = vld [vmem:[#allocation14 + $0x2c] sm:$0xf]
    %v1456 = vld [vmem:[#allocation14 + $0x30] sm:$0xf]
    %v1457 = vld [vmem:[#allocation14 + $0x34] sm:$0xf]
    %v1458 = vld [vmem:[#allocation14 + $0x38] sm:$0xf]
    %v1459 = vld [vmem:[#allocation14 + $0x3c] sm:$0xf]
    %v1476 = vunpack.c.l.b16 %v1444
    %v1477 = vunpack.c.l.b16 %v1445
    %v1478 = vunpack.c.l.b16 %v1446
    %v1479 = vunpack.c.l.b16 %v1447
    %v1480 = vunpack.c.l.b16 %v1448
    %v1481 = vunpack.c.l.b16 %v1449
    %v1482 = vunpack.c.l.b16 %v1450
    %v1483 = vunpack.c.l.b16 %v1451
    %v1484 = vunpack.c.l.b16 %v1452
    %v1485 = vunpack.c.l.b16 %v1453
    %v1486 = vunpack.c.l.b16 %v1454
    %v1487 = vunpack.c.l.b16 %v1455
    %v1488 = vunpack.c.l.b16 %v1456
    %v1489 = vunpack.c.l.b16 %v1457
    %v1490 = vunpack.c.l.b16 %v1458
    %v1491 = vunpack.c.l.b16 %v1459
    %v1492 = vpack.c.b16 %v1477, %v1476
    %v1493 = vpack.c.b16 %v1479, %v1478
    %v1494 = vpack.c.b16 %v1481, %v1480
    %v1495 = vpack.c.b16 %v1483, %v1482
    %v1496 = vpack.c.b16 %v1485, %v1484
    %v1497 = vpack.c.b16 %v1487, %v1486
    %v1498 = vpack.c.b16 %v1489, %v1488
    %v1499 = vpack.c.b16 %v1491, %v1490
    %1508 = vmatprep.subr.bf16.mxu0 0
    %1509 = vmatpush1.bf16.msra.mxu0 %v1492
    %1510 = vmatprep.subr.bf16.mxu0 0
    %1511 = vmatpush1.bf16.msra.mxu0 %v1493
    %1512 = vmatprep.subr.bf16.mxu0 0
    %1513 = vmatpush1.bf16.msra.mxu0 %v1494
    %1514 = vmatprep.subr.bf16.mxu0 0
    %1515 = vmatpush1.bf16.msra.mxu0 %v1495
    %1516 = vmatprep.subr.bf16.mxu0 0
    %1517 = vmatpush1.bf16.msra.mxu0 %v1496
    %1518 = vmatprep.subr.bf16.mxu0 0
    %1519 = vmatpush1.bf16.msra.mxu0 %v1497
    %1520 = vmatprep.subr.bf16.mxu0 0
    %1521 = vmatpush1.bf16.msra.mxu0 %v1498
    %1522 = vmatprep.subr.bf16.mxu0 0
    %1523 = vmatpush1.bf16.msra.mxu0 %v1499
    %1524 = vmatprep.subr.bf16.mxu0 0
    %1525 = vmatpush1.bf16.msra.mxu0 0
    %1526 = vmatprep.subr.bf16.mxu0 0
    %1527 = vmatpush1.bf16.msra.mxu0 0
    %1528 = vmatprep.subr.bf16.mxu0 0
    %1529 = vmatpush1.bf16.msra.mxu0 0
    %1530 = vmatprep.subr.bf16.mxu0 0
    %1531 = vmatpush1.bf16.msra.mxu0 0
    %1532 = vmatprep.subr.bf16.mxu0 0
    %1533 = vmatpush1.bf16.msra.mxu0 0
    %1534 = vmatprep.subr.bf16.mxu0 0
    %1535 = vmatpush1.bf16.msra.mxu0 0
    %1536 = vmatprep.subr.bf16.mxu0 0
    %1537 = vmatpush1.bf16.msra.mxu0 0
    %1538 = vmatprep.subr.bf16.mxu0 0
    %1539 = vmatpush1.bf16.msra.mxu0 0
    %1540 = vmatprep.mubr.bf16.mxu0 0
    %1541 = vmatmul.mubr.bf16.gmra.mrb[0].mxu0 %v1443
    %v1542 = vpop.f32.mrb[0].mxu0
    %v1543 = vadd.f32 0.0, %v1542
    %v1544 = vpop.f32.mrb[0].mxu0
    %v1545 = vpop.f32.mrb[0].mxu0
    %v1546 = vpop.f32.mrb[0].mxu0
    %1547 = vdwg.mxu0
    %v1548 = vadd.f32 %v1438, %v1543
    %v1549 = vld [vmem:[%s12] sm:$0x1]
    %v1551 = vlaneseq
    %v1552 = vshrl.u32 %v1551, 7
    %v1553 = vsub.s32 0, %v1552
    %v1554 = vrot.slane %v1549, %v1553
    %v1556 = vadd.f32 %v1548, %v1554
    %1557 = vst [vmem:[#allocation16] sm:$0xff] %v1556
    // Predicated region
    $region86: #{tpu_custom_call.1} parent=1 // pred_check
      _
    $region87: #{tpu_custom_call.1} parent=1 // pred_check_branch
      %1559 = sbr.rel (0) target = $region89
    $region88: #{tpu_custom_call.1} parent=1 // pred_region
      %s1561 = ssub.s32 128, 128
      %1562 = vsyncadd [#allocation4], %s1561
      %s1564 = sshll.u32 [#allocation16], 4
      %s1565 = int_to_ptr.vmem [resolvable:$true] %s1564
      %1567 = dma.vmem_to_hbm [thread:$0]  %s1565, 128, %s13, [#allocation4]
    $region89: #{tpu_custom_call.1} parent=1 // pred_fallthru
      _
    // Predicated region
    $region90: #{tpu_custom_call.1} parent=1 // pred_check
      _
    $region91: #{tpu_custom_call.1} parent=1 // pred_check_branch
      %1569 = sbr.rel (0) target = $region93
    $region92: #{tpu_custom_call.1} parent=1 // pred_region
      %1570 = dma.done [#allocation4], 128
    $region93: #{tpu_custom_call.1} parent=1 // pred_fallthru
      _
    %1571 = vsyncpa [#allocation3], 1
    %1572 = vsyncpa [#allocation6], 1
    %1573 = vsyncpa [#allocation9], 1
    %1574 = vsyncpa [#allocation12], 1
    %1575 = vsyncpa [#allocation15], 1
    %1576 = vsyncpa [#allocation4], 1

</llo_original>
